<compile_context>
chip_gen: v7x
topology: tpu7x:2x2x1
jax: 0.10.0
libtpu: 0.0.40
codegen_flags: <defaults>
</compile_context>

<pallas_src>
import functools

import jax
import jax.numpy as jnp
from jax.experimental import pallas as pl
from jax.experimental.pallas import tpu as pltpu


def _lstm_kernel(x2d_ref, wih_ref, whh_ref, b_ref, h0_ref, c0_ref,
                 out_ref, hn_ref, cn_ref, *, seq_len, batch, hidden_dim):
    T, Bp, H = seq_len, batch, hidden_dim

    # --- Hoisted input projection: one big MXU matmul, bias folded in. ---
    # x2d: (T*Bp, E)  @  W_ih^T: (E, 4H)  ->  (T*Bp, 4H)
    x_proj = (jnp.dot(x2d_ref[...], wih_ref[...],
                      preferred_element_type=jnp.float32)
              + b_ref[...])

    w_hh = whh_ref[...]          # (H, 4H) — held in registers/VMEM across all steps
    h = h0_ref[...]              # (Bp, H) f32
    c = c0_ref[...]              # (Bp, H) f32

    # --- Serial recurrence, statically unrolled (T is a small compile-time constant). ---
    for t in range(T):
        gates = (x_proj[t * Bp:(t + 1) * Bp, :]
                 + jnp.dot(h, w_hh, preferred_element_type=jnp.float32))  # (Bp, 4H)

        # 128-aligned lane slices (no XLU traffic); gate order matches PyTorch: i, f, g, o.
        i_g = jax.nn.sigmoid(gates[:, 0 * H:1 * H])
        f_g = jax.nn.sigmoid(gates[:, 1 * H:2 * H])
        g_g = jnp.tanh(gates[:, 2 * H:3 * H])
        o_g = jax.nn.sigmoid(gates[:, 3 * H:4 * H])

        c = f_g * c + i_g * g_g
        h = o_g * jnp.tanh(c)

        out_ref[t] = h.astype(out_ref.dtype)

    # Final state written exactly once.
    hn_ref[...] = h.astype(hn_ref.dtype)
    cn_ref[...] = c.astype(cn_ref.dtype)


def traj_dec_lstm_forward(traj_data, hidden, params):
    """traj_data: [T, B, E] f32; hidden = (h0, c0) each [1, B, H]."""
    w_ih, w_hh, b_ih, b_hh = params          # [4H,E], [4H,H], [4H], [4H]
    T, B, E = traj_data.shape
    H = w_hh.shape[1]
    G = 4 * H

    wih_t = jnp.transpose(w_ih)              # [E, 4H]
    whh_t = jnp.transpose(w_hh)              # [H, 4H]
    bias = (b_ih + b_hh).reshape(1, G)       # [1, 4H]

    # Pad batch to a multiple of 8 sublanes so matmul M-dim / gate vregs are full.
    Bp = ((B + 7) // 8) * 8
    pad = Bp - B
    if pad:
        traj_p = jnp.pad(traj_data, ((0, 0), (0, pad), (0, 0)))
        h0p = jnp.pad(hidden[0].reshape(B, H), ((0, pad), (0, 0)))
        c0p = jnp.pad(hidden[1].reshape(B, H), ((0, pad), (0, 0)))
    else:
        traj_p = traj_data
        h0p = hidden[0].reshape(B, H)
        c0p = hidden[1].reshape(B, H)

    # Flatten time into rows in the wrapper (free XLA reshape) so the kernel's hoisted
    # input projection is a single 2-D matmul with no in-kernel relayout.
    x2d = traj_p.reshape(T * Bp, E)

    kernel = functools.partial(_lstm_kernel, seq_len=T, batch=Bp, hidden_dim=H)
    vmem = pltpu.MemorySpace.VMEM

    out_p, hn_p, cn_p = pl.pallas_call(
        kernel,
        out_shape=(
            jax.ShapeDtypeStruct((T, Bp, H), traj_data.dtype),
            jax.ShapeDtypeStruct((Bp, H), traj_data.dtype),
            jax.ShapeDtypeStruct((Bp, H), traj_data.dtype),
        ),
        in_specs=[
            pl.BlockSpec(memory_space=vmem),   # x2d        (T*Bp, E)
            pl.BlockSpec(memory_space=vmem),   # W_ih^T     (E, 4H)
            pl.BlockSpec(memory_space=vmem),   # W_hh^T     (H, 4H)
            pl.BlockSpec(memory_space=vmem),   # bias       (1, 4H)
            pl.BlockSpec(memory_space=vmem),   # h0         (Bp, H)
            pl.BlockSpec(memory_space=vmem),   # c0         (Bp, H)
        ],
        out_specs=(
            pl.BlockSpec(memory_space=vmem),   # out        (T, Bp, H)
            pl.BlockSpec(memory_space=vmem),   # h_n        (Bp, H)
            pl.BlockSpec(memory_space=vmem),   # c_n        (Bp, H)
        ),
    )(x2d, wih_t, whh_t, bias, h0p, c0p)

    out = out_p[:, :B, :]
    h_n = hn_p[:B].reshape(1, B, H)
    c_n = cn_p[:B].reshape(1, B, H)
    return out, (h_n, c_n)


def _reference_lstm(traj_data, hidden, params):
    """Pure-JAX reference matching torch.nn.LSTM semantics (gate order i,f,g,o)."""
    w_ih, w_hh, b_ih, b_hh = params
    H = w_hh.shape[1]
    h0 = hidden[0][0]
    c0 = hidden[1][0]

    def step(carry, x_t):
        h, c = carry
        gates = x_t @ w_ih.T + h @ w_hh.T + b_ih + b_hh
        i = jax.nn.sigmoid(gates[:, 0 * H:1 * H])
        f = jax.nn.sigmoid(gates[:, 1 * H:2 * H])
        g = jnp.tanh(gates[:, 2 * H:3 * H])
        o = jax.nn.sigmoid(gates[:, 3 * H:4 * H])
        c_new = f * c + i * g
        h_new = o * jnp.tanh(c_new)
        return (h_new, c_new), h_new

    (h_n, c_n), out = jax.lax.scan(step, (h0, c0), traj_data)
    return out, (h_n[None], c_n[None])


if __name__ == "__main__":
    emb_dim, hidden_dim = 256, 128   # module defaults
    T, B = 8, 4                      # seq len, batch (time-major, like nn.LSTM default)

    key = jax.random.PRNGKey(0)
    k = jax.random.split(key, 7)
    bound = 1.0 / (hidden_dim ** 0.5)   # PyTorch LSTM default init: U(-1/sqrt(H), 1/sqrt(H))

    w_ih = jax.random.uniform(k[0], (4 * hidden_dim, emb_dim), jnp.float32, -bound, bound)
    w_hh = jax.random.uniform(k[1], (4 * hidden_dim, hidden_dim), jnp.float32, -bound, bound)
    b_ih = jax.random.uniform(k[2], (4 * hidden_dim,), jnp.float32, -bound, bound)
    b_hh = jax.random.uniform(k[3], (4 * hidden_dim,), jnp.float32, -bound, bound)
    params = (w_ih, w_hh, b_ih, b_hh)

    traj_data = jax.random.normal(k[4], (T, B, emb_dim), jnp.float32)
    h0 = jax.random.normal(k[5], (1, B, hidden_dim), jnp.float32)
    c0 = jax.random.normal(k[6], (1, B, hidden_dim), jnp.float32)

    out, (h_n, c_n) = traj_dec_lstm_forward(traj_data, (h0, c0), params)
    jax.block_until_ready((out, h_n, c_n))

    ref_out, (ref_h, ref_c) = _reference_lstm(traj_data, (h0, c0), params)
    assert out.shape == (T, B, hidden_dim)
    assert h_n.shape == (1, B, hidden_dim) and c_n.shape == (1, B, hidden_dim)
    assert jnp.allclose(out, ref_out, atol=2e-3, rtol=2e-3)
    assert jnp.allclose(h_n, ref_h, atol=2e-3, rtol=2e-3)
    assert jnp.allclose(c_n, ref_c, atol=2e-3, rtol=2e-3)

    print("KERNEL_OK")
</pallas_src>

<mosaic_0001>
module attributes {stable_mosaic.version = 11 : i64} {
  func.func @_lstm_kernel(%arg0: memref<64x256xf32, #tpu.memory_space<vmem>>, %arg1: memref<256x512xf32, #tpu.memory_space<vmem>>, %arg2: memref<128x512xf32, #tpu.memory_space<vmem>>, %arg3: memref<1x512xf32, #tpu.memory_space<vmem>>, %arg4: memref<8x128xf32, #tpu.memory_space<vmem>>, %arg5: memref<8x128xf32, #tpu.memory_space<vmem>>, %arg6: memref<8x8x128xf32, #tpu.memory_space<vmem>>, %arg7: memref<8x128xf32, #tpu.memory_space<vmem>>, %arg8: memref<8x128xf32, #tpu.memory_space<vmem>>) attributes {dimension_semantics = [], scalar_prefetch = 0 : i64, scratch_operands = 0 : i64, tpu.core_type = #tpu.core_type<tc>} {
    %c0 = arith.constant 0 : index
    %c0_0 = arith.constant 0 : index
    %0 = vector.load %arg0[%c0, %c0_0] : memref<64x256xf32, #tpu.memory_space<vmem>>, vector<64x256xf32>
    %c0_1 = arith.constant 0 : index
    %c0_2 = arith.constant 0 : index
    %1 = vector.load %arg1[%c0_1, %c0_2] : memref<256x512xf32, #tpu.memory_space<vmem>>, vector<256x512xf32>
    %cst = arith.constant dense<0.000000e+00> : vector<64x512xf32>
    %2 = tpu.matmul %0, %1, %cst {dimension_numbers = #tpu.dot_dimension_numbers<[1], [0], [0], [1], [0, 0, 1, 1], [], []>} : vector<64x256xf32>, vector<256x512xf32>, vector<64x512xf32> -> vector<64x512xf32>
    %c0_3 = arith.constant 0 : index
    %c0_4 = arith.constant 0 : index
    %3 = vector.load %arg3[%c0_3, %c0_4] : memref<1x512xf32, #tpu.memory_space<vmem>>, vector<1x512xf32>
    %4 = vector.broadcast %3 : vector<1x512xf32> to vector<64x512xf32>
    %5 = arith.addf %2, %4 : vector<64x512xf32>
    %c0_5 = arith.constant 0 : index
    %c0_6 = arith.constant 0 : index
    %6 = vector.load %arg2[%c0_5, %c0_6] : memref<128x512xf32, #tpu.memory_space<vmem>>, vector<128x512xf32>
    %c0_7 = arith.constant 0 : index
    %c0_8 = arith.constant 0 : index
    %7 = vector.load %arg4[%c0_7, %c0_8] : memref<8x128xf32, #tpu.memory_space<vmem>>, vector<8x128xf32>
    %c0_9 = arith.constant 0 : index
    %c0_10 = arith.constant 0 : index
    %8 = vector.load %arg5[%c0_9, %c0_10] : memref<8x128xf32, #tpu.memory_space<vmem>>, vector<8x128xf32>
    %9 = vector.extract_strided_slice %5 {offsets = [0, 0], sizes = [8, 512], strides = [1, 1]} : vector<64x512xf32> to vector<8x512xf32>
    %cst_11 = arith.constant dense<0.000000e+00> : vector<8x512xf32>
    %10 = tpu.matmul %7, %6, %cst_11 {dimension_numbers = #tpu.dot_dimension_numbers<[1], [0], [0], [1], [0, 0, 1, 1], [], []>} : vector<8x128xf32>, vector<128x512xf32>, vector<8x512xf32> -> vector<8x512xf32>
    %11 = arith.addf %9, %10 : vector<8x512xf32>
    %12 = vector.extract_strided_slice %11 {offsets = [0, 0], sizes = [8, 128], strides = [1, 1]} : vector<8x512xf32> to vector<8x128xf32>
    %13 = arith.negf %12 : vector<8x128xf32>
    %14 = math.exp %13 : vector<8x128xf32>
    %cst_12 = arith.constant 1.000000e+00 : f32
    %15 = vector.broadcast %cst_12 : f32 to vector<8x128xf32>
    %16 = arith.addf %15, %14 : vector<8x128xf32>
    %17 = arith.divf %15, %16 : vector<8x128xf32>
    %18 = vector.extract_strided_slice %11 {offsets = [0, 128], sizes = [8, 128], strides = [1, 1]} : vector<8x512xf32> to vector<8x128xf32>
    %19 = arith.negf %18 : vector<8x128xf32>
    %20 = math.exp %19 : vector<8x128xf32>
    %cst_13 = arith.constant 1.000000e+00 : f32
    %21 = vector.broadcast %cst_13 : f32 to vector<8x128xf32>
    %22 = arith.addf %21, %20 : vector<8x128xf32>
    %23 = arith.divf %21, %22 : vector<8x128xf32>
    %24 = vector.extract_strided_slice %11 {offsets = [0, 256], sizes = [8, 128], strides = [1, 1]} : vector<8x512xf32> to vector<8x128xf32>
    %25 = math.tanh %24 : vector<8x128xf32>
    %26 = vector.extract_strided_slice %11 {offsets = [0, 384], sizes = [8, 128], strides = [1, 1]} : vector<8x512xf32> to vector<8x128xf32>
    %27 = arith.negf %26 : vector<8x128xf32>
    %28 = math.exp %27 : vector<8x128xf32>
    %cst_14 = arith.constant 1.000000e+00 : f32
    %29 = vector.broadcast %cst_14 : f32 to vector<8x128xf32>
    %30 = arith.addf %29, %28 : vector<8x128xf32>
    %31 = arith.divf %29, %30 : vector<8x128xf32>
    %32 = arith.mulf %23, %8 : vector<8x128xf32>
    %33 = arith.mulf %17, %25 : vector<8x128xf32>
    %34 = arith.addf %32, %33 : vector<8x128xf32>
    %35 = math.tanh %34 : vector<8x128xf32>
    %36 = arith.mulf %31, %35 : vector<8x128xf32>
    %c0_15 = arith.constant 0 : index
    %c0_16 = arith.constant 0 : index
    %c0_17 = arith.constant 0 : index
    %37 = vector.load %arg6[%c0_15, %c0_16, %c0_17] : memref<8x8x128xf32, #tpu.memory_space<vmem>>, vector<1x8x128xf32>
    %38 = vector.shape_cast %37 : vector<1x8x128xf32> to vector<8x128xf32>
    %39 = vector.shape_cast %36 : vector<8x128xf32> to vector<1x8x128xf32>
    tpu.vector_store %arg6[%c0_15, %c0_16, %c0_17], %39 {strides = array<i32>} : memref<8x8x128xf32, #tpu.memory_space<vmem>>, vector<1x8x128xf32>,
    %40 = vector.extract_strided_slice %5 {offsets = [8, 0], sizes = [8, 512], strides = [1, 1]} : vector<64x512xf32> to vector<8x512xf32>
    %cst_18 = arith.constant dense<0.000000e+00> : vector<8x512xf32>
    %41 = tpu.matmul %36, %6, %cst_18 {dimension_numbers = #tpu.dot_dimension_numbers<[1], [0], [0], [1], [0, 0, 1, 1], [], []>} : vector<8x128xf32>, vector<128x512xf32>, vector<8x512xf32> -> vector<8x512xf32>
    %42 = arith.addf %40, %41 : vector<8x512xf32>
    %43 = vector.extract_strided_slice %42 {offsets = [0, 0], sizes = [8, 128], strides = [1, 1]} : vector<8x512xf32> to vector<8x128xf32>
    %44 = arith.negf %43 : vector<8x128xf32>
    %45 = math.exp %44 : vector<8x128xf32>
    %cst_19 = arith.constant 1.000000e+00 : f32
    %46 = vector.broadcast %cst_19 : f32 to vector<8x128xf32>
    %47 = arith.addf %46, %45 : vector<8x128xf32>
    %48 = arith.divf %46, %47 : vector<8x128xf32>
    %49 = vector.extract_strided_slice %42 {offsets = [0, 128], sizes = [8, 128], strides = [1, 1]} : vector<8x512xf32> to vector<8x128xf32>
    %50 = arith.negf %49 : vector<8x128xf32>
    %51 = math.exp %50 : vector<8x128xf32>
    %cst_20 = arith.constant 1.000000e+00 : f32
    %52 = vector.broadcast %cst_20 : f32 to vector<8x128xf32>
    %53 = arith.addf %52, %51 : vector<8x128xf32>
    %54 = arith.divf %52, %53 : vector<8x128xf32>
    %55 = vector.extract_strided_slice %42 {offsets = [0, 256], sizes = [8, 128], strides = [1, 1]} : vector<8x512xf32> to vector<8x128xf32>
    %56 = math.tanh %55 : vector<8x128xf32>
    %57 = vector.extract_strided_slice %42 {offsets = [0, 384], sizes = [8, 128], strides = [1, 1]} : vector<8x512xf32> to vector<8x128xf32>
    %58 = arith.negf %57 : vector<8x128xf32>
    %59 = math.exp %58 : vector<8x128xf32>
    %cst_21 = arith.constant 1.000000e+00 : f32
    %60 = vector.broadcast %cst_21 : f32 to vector<8x128xf32>
    %61 = arith.addf %60, %59 : vector<8x128xf32>
    %62 = arith.divf %60, %61 : vector<8x128xf32>
    %63 = arith.mulf %54, %34 : vector<8x128xf32>
    %64 = arith.mulf %48, %56 : vector<8x128xf32>
    %65 = arith.addf %63, %64 : vector<8x128xf32>
    %66 = math.tanh %65 : vector<8x128xf32>
    %67 = arith.mulf %62, %66 : vector<8x128xf32>
    %c1 = arith.constant 1 : index
    %c0_22 = arith.constant 0 : index
    %c0_23 = arith.constant 0 : index
    %68 = vector.load %arg6[%c1, %c0_22, %c0_23] : memref<8x8x128xf32, #tpu.memory_space<vmem>>, vector<1x8x128xf32>
    %69 = vector.shape_cast %68 : vector<1x8x128xf32> to vector<8x128xf32>
    %70 = vector.shape_cast %67 : vector<8x128xf32> to vector<1x8x128xf32>
    tpu.vector_store %arg6[%c1, %c0_22, %c0_23], %70 {strides = array<i32>} : memref<8x8x128xf32, #tpu.memory_space<vmem>>, vector<1x8x128xf32>,
    %71 = vector.extract_strided_slice %5 {offsets = [16, 0], sizes = [8, 512], strides = [1, 1]} : vector<64x512xf32> to vector<8x512xf32>
    %cst_24 = arith.constant dense<0.000000e+00> : vector<8x512xf32>
    %72 = tpu.matmul %67, %6, %cst_24 {dimension_numbers = #tpu.dot_dimension_numbers<[1], [0], [0], [1], [0, 0, 1, 1], [], []>} : vector<8x128xf32>, vector<128x512xf32>, vector<8x512xf32> -> vector<8x512xf32>
    %73 = arith.addf %71, %72 : vector<8x512xf32>
    %74 = vector.extract_strided_slice %73 {offsets = [0, 0], sizes = [8, 128], strides = [1, 1]} : vector<8x512xf32> to vector<8x128xf32>
    %75 = arith.negf %74 : vector<8x128xf32>
    %76 = math.exp %75 : vector<8x128xf32>
    %cst_25 = arith.constant 1.000000e+00 : f32
    %77 = vector.broadcast %cst_25 : f32 to vector<8x128xf32>
    %78 = arith.addf %77, %76 : vector<8x128xf32>
    %79 = arith.divf %77, %78 : vector<8x128xf32>
    %80 = vector.extract_strided_slice %73 {offsets = [0, 128], sizes = [8, 128], strides = [1, 1]} : vector<8x512xf32> to vector<8x128xf32>
    %81 = arith.negf %80 : vector<8x128xf32>
    %82 = math.exp %81 : vector<8x128xf32>
    %cst_26 = arith.constant 1.000000e+00 : f32
    %83 = vector.broadcast %cst_26 : f32 to vector<8x128xf32>
    %84 = arith.addf %83, %82 : vector<8x128xf32>
    %85 = arith.divf %83, %84 : vector<8x128xf32>
    %86 = vector.extract_strided_slice %73 {offsets = [0, 256], sizes = [8, 128], strides = [1, 1]} : vector<8x512xf32> to vector<8x128xf32>
    %87 = math.tanh %86 : vector<8x128xf32>
    %88 = vector.extract_strided_slice %73 {offsets = [0, 384], sizes = [8, 128], strides = [1, 1]} : vector<8x512xf32> to vector<8x128xf32>
    %89 = arith.negf %88 : vector<8x128xf32>
    %90 = math.exp %89 : vector<8x128xf32>
    %cst_27 = arith.constant 1.000000e+00 : f32
    %91 = vector.broadcast %cst_27 : f32 to vector<8x128xf32>
    %92 = arith.addf %91, %90 : vector<8x128xf32>
    %93 = arith.divf %91, %92 : vector<8x128xf32>
    %94 = arith.mulf %85, %65 : vector<8x128xf32>
    %95 = arith.mulf %79, %87 : vector<8x128xf32>
    %96 = arith.addf %94, %95 : vector<8x128xf32>
    %97 = math.tanh %96 : vector<8x128xf32>
    %98 = arith.mulf %93, %97 : vector<8x128xf32>
    %c2 = arith.constant 2 : index
    %c0_28 = arith.constant 0 : index
    %c0_29 = arith.constant 0 : index
    %99 = vector.load %arg6[%c2, %c0_28, %c0_29] : memref<8x8x128xf32, #tpu.memory_space<vmem>>, vector<1x8x128xf32>
    %100 = vector.shape_cast %99 : vector<1x8x128xf32> to vector<8x128xf32>
    %101 = vector.shape_cast %98 : vector<8x128xf32> to vector<1x8x128xf32>
    tpu.vector_store %arg6[%c2, %c0_28, %c0_29], %101 {strides = array<i32>} : memref<8x8x128xf32, #tpu.memory_space<vmem>>, vector<1x8x128xf32>,
    %102 = vector.extract_strided_slice %5 {offsets = [24, 0], sizes = [8, 512], strides = [1, 1]} : vector<64x512xf32> to vector<8x512xf32>
    %cst_30 = arith.constant dense<0.000000e+00> : vector<8x512xf32>
    %103 = tpu.matmul %98, %6, %cst_30 {dimension_numbers = #tpu.dot_dimension_numbers<[1], [0], [0], [1], [0, 0, 1, 1], [], []>} : vector<8x128xf32>, vector<128x512xf32>, vector<8x512xf32> -> vector<8x512xf32>
    %104 = arith.addf %102, %103 : vector<8x512xf32>
    %105 = vector.extract_strided_slice %104 {offsets = [0, 0], sizes = [8, 128], strides = [1, 1]} : vector<8x512xf32> to vector<8x128xf32>
    %106 = arith.negf %105 : vector<8x128xf32>
    %107 = math.exp %106 : vector<8x128xf32>
    %cst_31 = arith.constant 1.000000e+00 : f32
    %108 = vector.broadcast %cst_31 : f32 to vector<8x128xf32>
    %109 = arith.addf %108, %107 : vector<8x128xf32>
    %110 = arith.divf %108, %109 : vector<8x128xf32>
    %111 = vector.extract_strided_slice %104 {offsets = [0, 128], sizes = [8, 128], strides = [1, 1]} : vector<8x512xf32> to vector<8x128xf32>
    %112 = arith.negf %111 : vector<8x128xf32>
    %113 = math.exp %112 : vector<8x128xf32>
    %cst_32 = arith.constant 1.000000e+00 : f32
    %114 = vector.broadcast %cst_32 : f32 to vector<8x128xf32>
    %115 = arith.addf %114, %113 : vector<8x128xf32>
    %116 = arith.divf %114, %115 : vector<8x128xf32>
    %117 = vector.extract_strided_slice %104 {offsets = [0, 256], sizes = [8, 128], strides = [1, 1]} : vector<8x512xf32> to vector<8x128xf32>
    %118 = math.tanh %117 : vector<8x128xf32>
    %119 = vector.extract_strided_slice %104 {offsets = [0, 384], sizes = [8, 128], strides = [1, 1]} : vector<8x512xf32> to vector<8x128xf32>
    %120 = arith.negf %119 : vector<8x128xf32>
    %121 = math.exp %120 : vector<8x128xf32>
    %cst_33 = arith.constant 1.000000e+00 : f32
    %122 = vector.broadcast %cst_33 : f32 to vector<8x128xf32>
    %123 = arith.addf %122, %121 : vector<8x128xf32>
    %124 = arith.divf %122, %123 : vector<8x128xf32>
    %125 = arith.mulf %116, %96 : vector<8x128xf32>
    %126 = arith.mulf %110, %118 : vector<8x128xf32>
    %127 = arith.addf %125, %126 : vector<8x128xf32>
    %128 = math.tanh %127 : vector<8x128xf32>
    %129 = arith.mulf %124, %128 : vector<8x128xf32>
    %c3 = arith.constant 3 : index
    %c0_34 = arith.constant 0 : index
    %c0_35 = arith.constant 0 : index
    %130 = vector.load %arg6[%c3, %c0_34, %c0_35] : memref<8x8x128xf32, #tpu.memory_space<vmem>>, vector<1x8x128xf32>
    %131 = vector.shape_cast %130 : vector<1x8x128xf32> to vector<8x128xf32>
    %132 = vector.shape_cast %129 : vector<8x128xf32> to vector<1x8x128xf32>
    tpu.vector_store %arg6[%c3, %c0_34, %c0_35], %132 {strides = array<i32>} : memref<8x8x128xf32, #tpu.memory_space<vmem>>, vector<1x8x128xf32>,
    %133 = vector.extract_strided_slice %5 {offsets = [32, 0], sizes = [8, 512], strides = [1, 1]} : vector<64x512xf32> to vector<8x512xf32>
    %cst_36 = arith.constant dense<0.000000e+00> : vector<8x512xf32>
    %134 = tpu.matmul %129, %6, %cst_36 {dimension_numbers = #tpu.dot_dimension_numbers<[1], [0], [0], [1], [0, 0, 1, 1], [], []>} : vector<8x128xf32>, vector<128x512xf32>, vector<8x512xf32> -> vector<8x512xf32>
    %135 = arith.addf %133, %134 : vector<8x512xf32>
    %136 = vector.extract_strided_slice %135 {offsets = [0, 0], sizes = [8, 128], strides = [1, 1]} : vector<8x512xf32> to vector<8x128xf32>
    %137 = arith.negf %136 : vector<8x128xf32>
    %138 = math.exp %137 : vector<8x128xf32>
    %cst_37 = arith.constant 1.000000e+00 : f32
    %139 = vector.broadcast %cst_37 : f32 to vector<8x128xf32>
    %140 = arith.addf %139, %138 : vector<8x128xf32>
    %141 = arith.divf %139, %140 : vector<8x128xf32>
    %142 = vector.extract_strided_slice %135 {offsets = [0, 128], sizes = [8, 128], strides = [1, 1]} : vector<8x512xf32> to vector<8x128xf32>
    %143 = arith.negf %142 : vector<8x128xf32>
    %144 = math.exp %143 : vector<8x128xf32>
    %cst_38 = arith.constant 1.000000e+00 : f32
    %145 = vector.broadcast %cst_38 : f32 to vector<8x128xf32>
    %146 = arith.addf %145, %144 : vector<8x128xf32>
    %147 = arith.divf %145, %146 : vector<8x128xf32>
    %148 = vector.extract_strided_slice %135 {offsets = [0, 256], sizes = [8, 128], strides = [1, 1]} : vector<8x512xf32> to vector<8x128xf32>
    %149 = math.tanh %148 : vector<8x128xf32>
    %150 = vector.extract_strided_slice %135 {offsets = [0, 384], sizes = [8, 128], strides = [1, 1]} : vector<8x512xf32> to vector<8x128xf32>
    %151 = arith.negf %150 : vector<8x128xf32>
    %152 = math.exp %151 : vector<8x128xf32>
    %cst_39 = arith.constant 1.000000e+00 : f32
    %153 = vector.broadcast %cst_39 : f32 to vector<8x128xf32>
    %154 = arith.addf %153, %152 : vector<8x128xf32>
    %155 = arith.divf %153, %154 : vector<8x128xf32>
    %156 = arith.mulf %147, %127 : vector<8x128xf32>
    %157 = arith.mulf %141, %149 : vector<8x128xf32>
    %158 = arith.addf %156, %157 : vector<8x128xf32>
    %159 = math.tanh %158 : vector<8x128xf32>
    %160 = arith.mulf %155, %159 : vector<8x128xf32>
    %c4 = arith.constant 4 : index
    %c0_40 = arith.constant 0 : index
    %c0_41 = arith.constant 0 : index
    %161 = vector.load %arg6[%c4, %c0_40, %c0_41] : memref<8x8x128xf32, #tpu.memory_space<vmem>>, vector<1x8x128xf32>
    %162 = vector.shape_cast %161 : vector<1x8x128xf32> to vector<8x128xf32>
    %163 = vector.shape_cast %160 : vector<8x128xf32> to vector<1x8x128xf32>
    tpu.vector_store %arg6[%c4, %c0_40, %c0_41], %163 {strides = array<i32>} : memref<8x8x128xf32, #tpu.memory_space<vmem>>, vector<1x8x128xf32>,
    %164 = vector.extract_strided_slice %5 {offsets = [40, 0], sizes = [8, 512], strides = [1, 1]} : vector<64x512xf32> to vector<8x512xf32>
    %cst_42 = arith.constant dense<0.000000e+00> : vector<8x512xf32>
    %165 = tpu.matmul %160, %6, %cst_42 {dimension_numbers = #tpu.dot_dimension_numbers<[1], [0], [0], [1], [0, 0, 1, 1], [], []>} : vector<8x128xf32>, vector<128x512xf32>, vector<8x512xf32> -> vector<8x512xf32>
    %166 = arith.addf %164, %165 : vector<8x512xf32>
    %167 = vector.extract_strided_slice %166 {offsets = [0, 0], sizes = [8, 128], strides = [1, 1]} : vector<8x512xf32> to vector<8x128xf32>
    %168 = arith.negf %167 : vector<8x128xf32>
    %169 = math.exp %168 : vector<8x128xf32>
    %cst_43 = arith.constant 1.000000e+00 : f32
    %170 = vector.broadcast %cst_43 : f32 to vector<8x128xf32>
    %171 = arith.addf %170, %169 : vector<8x128xf32>
    %172 = arith.divf %170, %171 : vector<8x128xf32>
    %173 = vector.extract_strided_slice %166 {offsets = [0, 128], sizes = [8, 128], strides = [1, 1]} : vector<8x512xf32> to vector<8x128xf32>
    %174 = arith.negf %173 : vector<8x128xf32>
    %175 = math.exp %174 : vector<8x128xf32>
    %cst_44 = arith.constant 1.000000e+00 : f32
    %176 = vector.broadcast %cst_44 : f32 to vector<8x128xf32>
    %177 = arith.addf %176, %175 : vector<8x128xf32>
    %178 = arith.divf %176, %177 : vector<8x128xf32>
    %179 = vector.extract_strided_slice %166 {offsets = [0, 256], sizes = [8, 128], strides = [1, 1]} : vector<8x512xf32> to vector<8x128xf32>
    %180 = math.tanh %179 : vector<8x128xf32>
    %181 = vector.extract_strided_slice %166 {offsets = [0, 384], sizes = [8, 128], strides = [1, 1]} : vector<8x512xf32> to vector<8x128xf32>
    %182 = arith.negf %181 : vector<8x128xf32>
    %183 = math.exp %182 : vector<8x128xf32>
    %cst_45 = arith.constant 1.000000e+00 : f32
    %184 = vector.broadcast %cst_45 : f32 to vector<8x128xf32>
    %185 = arith.addf %184, %183 : vector<8x128xf32>
    %186 = arith.divf %184, %185 : vector<8x128xf32>
    %187 = arith.mulf %178, %158 : vector<8x128xf32>
    %188 = arith.mulf %172, %180 : vector<8x128xf32>
    %189 = arith.addf %187, %188 : vector<8x128xf32>
    %190 = math.tanh %189 : vector<8x128xf32>
    %191 = arith.mulf %186, %190 : vector<8x128xf32>
    %c5 = arith.constant 5 : index
    %c0_46 = arith.constant 0 : index
    %c0_47 = arith.constant 0 : index
    %192 = vector.load %arg6[%c5, %c0_46, %c0_47] : memref<8x8x128xf32, #tpu.memory_space<vmem>>, vector<1x8x128xf32>
    %193 = vector.shape_cast %192 : vector<1x8x128xf32> to vector<8x128xf32>
    %194 = vector.shape_cast %191 : vector<8x128xf32> to vector<1x8x128xf32>
    tpu.vector_store %arg6[%c5, %c0_46, %c0_47], %194 {strides = array<i32>} : memref<8x8x128xf32, #tpu.memory_space<vmem>>, vector<1x8x128xf32>,
    %195 = vector.extract_strided_slice %5 {offsets = [48, 0], sizes = [8, 512], strides = [1, 1]} : vector<64x512xf32> to vector<8x512xf32>
    %cst_48 = arith.constant dense<0.000000e+00> : vector<8x512xf32>
    %196 = tpu.matmul %191, %6, %cst_48 {dimension_numbers = #tpu.dot_dimension_numbers<[1], [0], [0], [1], [0, 0, 1, 1], [], []>} : vector<8x128xf32>, vector<128x512xf32>, vector<8x512xf32> -> vector<8x512xf32>
    %197 = arith.addf %195, %196 : vector<8x512xf32>
    %198 = vector.extract_strided_slice %197 {offsets = [0, 0], sizes = [8, 128], strides = [1, 1]} : vector<8x512xf32> to vector<8x128xf32>
    %199 = arith.negf %198 : vector<8x128xf32>
    %200 = math.exp %199 : vector<8x128xf32>
    %cst_49 = arith.constant 1.000000e+00 : f32
    %201 = vector.broadcast %cst_49 : f32 to vector<8x128xf32>
    %202 = arith.addf %201, %200 : vector<8x128xf32>
    %203 = arith.divf %201, %202 : vector<8x128xf32>
    %204 = vector.extract_strided_slice %197 {offsets = [0, 128], sizes = [8, 128], strides = [1, 1]} : vector<8x512xf32> to vector<8x128xf32>
    %205 = arith.negf %204 : vector<8x128xf32>
    %206 = math.exp %205 : vector<8x128xf32>
    %cst_50 = arith.constant 1.000000e+00 : f32
    %207 = vector.broadcast %cst_50 : f32 to vector<8x128xf32>
    %208 = arith.addf %207, %206 : vector<8x128xf32>
    %209 = arith.divf %207, %208 : vector<8x128xf32>
    %210 = vector.extract_strided_slice %197 {offsets = [0, 256], sizes = [8, 128], strides = [1, 1]} : vector<8x512xf32> to vector<8x128xf32>
    %211 = math.tanh %210 : vector<8x128xf32>
    %212 = vector.extract_strided_slice %197 {offsets = [0, 384], sizes = [8, 128], strides = [1, 1]} : vector<8x512xf32> to vector<8x128xf32>
    %213 = arith.negf %212 : vector<8x128xf32>
    %214 = math.exp %213 : vector<8x128xf32>
    %cst_51 = arith.constant 1.000000e+00 : f32
    %215 = vector.broadcast %cst_51 : f32 to vector<8x128xf32>
    %216 = arith.addf %215, %214 : vector<8x128xf32>
    %217 = arith.divf %215, %216 : vector<8x128xf32>
    %218 = arith.mulf %209, %189 : vector<8x128xf32>
    %219 = arith.mulf %203, %211 : vector<8x128xf32>
    %220 = arith.addf %218, %219 : vector<8x128xf32>
    %221 = math.tanh %220 : vector<8x128xf32>
    %222 = arith.mulf %217, %221 : vector<8x128xf32>
    %c6 = arith.constant 6 : index
    %c0_52 = arith.constant 0 : index
    %c0_53 = arith.constant 0 : index
    %223 = vector.load %arg6[%c6, %c0_52, %c0_53] : memref<8x8x128xf32, #tpu.memory_space<vmem>>, vector<1x8x128xf32>
    %224 = vector.shape_cast %223 : vector<1x8x128xf32> to vector<8x128xf32>
    %225 = vector.shape_cast %222 : vector<8x128xf32> to vector<1x8x128xf32>
    tpu.vector_store %arg6[%c6, %c0_52, %c0_53], %225 {strides = array<i32>} : memref<8x8x128xf32, #tpu.memory_space<vmem>>, vector<1x8x128xf32>,
    %226 = vector.extract_strided_slice %5 {offsets = [56, 0], sizes = [8, 512], strides = [1, 1]} : vector<64x512xf32> to vector<8x512xf32>
    %cst_54 = arith.constant dense<0.000000e+00> : vector<8x512xf32>
    %227 = tpu.matmul %222, %6, %cst_54 {dimension_numbers = #tpu.dot_dimension_numbers<[1], [0], [0], [1], [0, 0, 1, 1], [], []>} : vector<8x128xf32>, vector<128x512xf32>, vector<8x512xf32> -> vector<8x512xf32>
    %228 = arith.addf %226, %227 : vector<8x512xf32>
    %229 = vector.extract_strided_slice %228 {offsets = [0, 0], sizes = [8, 128], strides = [1, 1]} : vector<8x512xf32> to vector<8x128xf32>
    %230 = arith.negf %229 : vector<8x128xf32>
    %231 = math.exp %230 : vector<8x128xf32>
    %cst_55 = arith.constant 1.000000e+00 : f32
    %232 = vector.broadcast %cst_55 : f32 to vector<8x128xf32>
    %233 = arith.addf %232, %231 : vector<8x128xf32>
    %234 = arith.divf %232, %233 : vector<8x128xf32>
    %235 = vector.extract_strided_slice %228 {offsets = [0, 128], sizes = [8, 128], strides = [1, 1]} : vector<8x512xf32> to vector<8x128xf32>
    %236 = arith.negf %235 : vector<8x128xf32>
    %237 = math.exp %236 : vector<8x128xf32>
    %cst_56 = arith.constant 1.000000e+00 : f32
    %238 = vector.broadcast %cst_56 : f32 to vector<8x128xf32>
    %239 = arith.addf %238, %237 : vector<8x128xf32>
    %240 = arith.divf %238, %239 : vector<8x128xf32>
    %241 = vector.extract_strided_slice %228 {offsets = [0, 256], sizes = [8, 128], strides = [1, 1]} : vector<8x512xf32> to vector<8x128xf32>
    %242 = math.tanh %241 : vector<8x128xf32>
    %243 = vector.extract_strided_slice %228 {offsets = [0, 384], sizes = [8, 128], strides = [1, 1]} : vector<8x512xf32> to vector<8x128xf32>
    %244 = arith.negf %243 : vector<8x128xf32>
    %245 = math.exp %244 : vector<8x128xf32>
    %cst_57 = arith.constant 1.000000e+00 : f32
    %246 = vector.broadcast %cst_57 : f32 to vector<8x128xf32>
    %247 = arith.addf %246, %245 : vector<8x128xf32>
    %248 = arith.divf %246, %247 : vector<8x128xf32>
    %249 = arith.mulf %240, %220 : vector<8x128xf32>
    %250 = arith.mulf %234, %242 : vector<8x128xf32>
    %251 = arith.addf %249, %250 : vector<8x128xf32>
    %252 = math.tanh %251 : vector<8x128xf32>
    %253 = arith.mulf %248, %252 : vector<8x128xf32>
    %c7 = arith.constant 7 : index
    %c0_58 = arith.constant 0 : index
    %c0_59 = arith.constant 0 : index
    %254 = vector.load %arg6[%c7, %c0_58, %c0_59] : memref<8x8x128xf32, #tpu.memory_space<vmem>>, vector<1x8x128xf32>
    %255 = vector.shape_cast %254 : vector<1x8x128xf32> to vector<8x128xf32>
    %256 = vector.shape_cast %253 : vector<8x128xf32> to vector<1x8x128xf32>
    tpu.vector_store %arg6[%c7, %c0_58, %c0_59], %256 {strides = array<i32>} : memref<8x8x128xf32, #tpu.memory_space<vmem>>, vector<1x8x128xf32>,
    %c0_60 = arith.constant 0 : index
    %c0_61 = arith.constant 0 : index
    %257 = vector.load %arg7[%c0_60, %c0_61] : memref<8x128xf32, #tpu.memory_space<vmem>>, vector<8x128xf32>
    tpu.vector_store %arg7[%c0_60, %c0_61], %253 {strides = array<i32>} : memref<8x128xf32, #tpu.memory_space<vmem>>, vector<8x128xf32>,
    %c0_62 = arith.constant 0 : index
    %c0_63 = arith.constant 0 : index
    %258 = vector.load %arg8[%c0_62, %c0_63] : memref<8x128xf32, #tpu.memory_space<vmem>>, vector<8x128xf32>
    tpu.vector_store %arg8[%c0_62, %c0_63], %251 {strides = array<i32>} : memref<8x128xf32, #tpu.memory_space<vmem>>, vector<8x128xf32>,
    return
  }
}

</mosaic_0001>

<llo_original>
// kernel: tpu_custom_call.1
$region0: #{tpu_custom_call.1}
  #allocation0 [shape = 'u32[]', space=smem, size = 0x4, offset = 0x4, fixed_abs, tag = 'smem constant byte address 0x4 - core index']
  #allocation1 [shape = 'u32[144,128]{1,0:T(1,128)}', space=vmem, size = 0x12000, scoped, tag = 'internal scratch']
  %s0 = inlined_call_operand.hbm [shape: f32[64,256], index: 0, kind: input, shape index: {}]
  %s1 = inlined_call_operand.hbm [shape: f32[256,512], index: 1, kind: input, shape index: {}]
  %s2 = inlined_call_operand.hbm [shape: f32[128,512], index: 2, kind: input, shape index: {}]
  %s3 = inlined_call_operand.hbm [shape: f32[1,512], index: 3, kind: input, shape index: {}]
  %s4 = inlined_call_operand.vmem [shape: f32[8,128], index: 4, kind: input, shape index: {}]
  %s5 = inlined_call_operand.vmem [shape: f32[8,128], index: 5, kind: input, shape index: {}]
  %s6 = inlined_call_operand.hbm [shape: f32[8,8,128], index: 6, kind: output, shape index: {0}]
  %s7 = inlined_call_operand.hbm [shape: f32[8,128], index: 7, kind: output, shape index: {1}]
  %s8 = inlined_call_operand.hbm [shape: f32[8,128], index: 8, kind: output, shape index: {2}]
  %9 = xla_tuple %s6, %s7, %s8
  %s10 = sld [smem:[#allocation0]]
  $region66: #{tpu_custom_call.1} parent=0
    _
  %s12 = ssub.s32 1, %s10
  %s13 = scalar_select 0, %s12, %s10
  $region1: #{tpu_custom_call.1} parent=0
    #allocation2 [shape = 'u8[65536]{0}', space=vmem, size = 0x10000, scoped, tag = 'input window, operand 0, single buffered']
    #allocation3 [shape = 's32[1]{0}', space=sflag, size = 0x4, scoped, tag = 'scoped memory for tpu_custom_call.1']
    #allocation4 [shape = 's32[1]{0}', space=sflag, size = 0x4, scoped, tag = 'scoped memory for tpu_custom_call.1']
    #allocation5 [shape = 'u8[524288]{0}', space=vmem, size = 0x80000, scoped, tag = 'input window, operand 1, single buffered']
    #allocation6 [shape = 's32[1]{0}', space=sflag, size = 0x4, scoped, tag = 'scoped memory for tpu_custom_call.1']
    #allocation7 [shape = 'u8[262144]{0}', space=vmem, size = 0x40000, scoped, tag = 'input window, operand 2, single buffered']
    #allocation8 [shape = 'u8[2048]{0}', space=vmem, size = 0x800, scoped, tag = 'input window, operand 3, single buffered']
    #allocation9 [shape = 's32[1]{0}', space=sflag, size = 0x4, scoped, tag = 'scoped memory for tpu_custom_call.1']
    #allocation10 [shape = 'u8[32768]{0}', space=vmem, size = 0x8000, scoped, tag = 'output window, operand 0, single buffered']
    #allocation11 [shape = 'u8[4096]{0}', space=vmem, size = 0x1000, scoped, tag = 'output window, operand 1, single buffered']
    #allocation12 [shape = 's32[1]{0}', space=sflag, size = 0x4, scoped, tag = 'scoped memory for tpu_custom_call.1']
    #allocation13 [shape = 'u8[4096]{0}', space=vmem, size = 0x1000, scoped, tag = 'output window, operand 2, single buffered']
    %14 = vsyncpa [#allocation3], 0
    %15 = vsyncpa [#allocation6], 0
    %16 = vsyncpa [#allocation9], 0
    %17 = vsyncpa [#allocation4], 0
    %18 = vsyncpa [#allocation12], 0
    // Predicated region
    $region2: #{tpu_custom_call.1} parent=1 // pred_check
      _
    $region3: #{tpu_custom_call.1} parent=1 // pred_check_branch
      %20 = sbr.rel (0) target = $region5
    $region4: #{tpu_custom_call.1} parent=1 // pred_region
      %s22 = ssub.s32 2048, 2048
      %23 = vsyncadd [#allocation3], %s22
      %s24 = sshll.u32 [#allocation2], 4
      %s25 = int_to_ptr.vmem [resolvable:$true] %s24
      %30 = dma.hbm_to_vmem [thread:$0]  %s0, 2048, %s25, [#allocation3], 256, 256, 16
    $region5: #{tpu_custom_call.1} parent=1 // pred_fallthru
      _
    // Predicated region
    $region6: #{tpu_custom_call.1} parent=1 // pred_check
      _
    $region7: #{tpu_custom_call.1} parent=1 // pred_check_branch
      %32 = sbr.rel (0) target = $region9
    $region8: #{tpu_custom_call.1} parent=1 // pred_region
      %s34 = ssub.s32 16384, 16384
      %35 = vsyncadd [#allocation6], %s34
      %s36 = sshll.u32 [#allocation5], 4
      %s37 = int_to_ptr.vmem [resolvable:$true] %s36
      %42 = dma.hbm_to_vmem [thread:$0]  %s1, 16384, %s37, [#allocation6], 512, 512, 32
    $region9: #{tpu_custom_call.1} parent=1 // pred_fallthru
      _
    // Predicated region
    $region10: #{tpu_custom_call.1} parent=1 // pred_check
      _
    $region11: #{tpu_custom_call.1} parent=1 // pred_check_branch
      %44 = sbr.rel (0) target = $region13
    $region12: #{tpu_custom_call.1} parent=1 // pred_region
      %s46 = ssub.s32 8192, 8192
      %47 = vsyncadd [#allocation6], %s46
      %s48 = sshll.u32 [#allocation7], 4
      %s49 = int_to_ptr.vmem [resolvable:$true] %s48
      %54 = dma.hbm_to_vmem [thread:$0]  %s2, 8192, %s49, [#allocation6], 512, 512, 32
    $region13: #{tpu_custom_call.1} parent=1 // pred_fallthru
      _
    // Predicated region
    $region14: #{tpu_custom_call.1} parent=1 // pred_check
      _
    $region15: #{tpu_custom_call.1} parent=1 // pred_check_branch
      %56 = sbr.rel (0) target = $region17
    $region16: #{tpu_custom_call.1} parent=1 // pred_region
      %s58 = ssub.s32 64, 64
      %59 = vsyncadd [#allocation9], %s58
      %s61 = sshll.u32 [#allocation8], 4
      %s62 = int_to_ptr.vmem [resolvable:$true] %s61
      %64 = dma.hbm_to_vmem [thread:$0]  %s3, 64, %s62, [#allocation9]
    $region17: #{tpu_custom_call.1} parent=1 // pred_fallthru
      _
    // Predicated region
    $region18: #{tpu_custom_call.1} parent=1 // pred_check
      _
    $region19: #{tpu_custom_call.1} parent=1 // pred_check_branch
      %66 = sbr.rel (0) target = $region21
    $region20: #{tpu_custom_call.1} parent=1 // pred_region
      _
    $region21: #{tpu_custom_call.1} parent=1 // pred_fallthru
      _
    // Predicated region
    $region22: #{tpu_custom_call.1} parent=1 // pred_check
      _
    $region23: #{tpu_custom_call.1} parent=1 // pred_check_branch
      %68 = sbr.rel (0) target = $region25
    $region24: #{tpu_custom_call.1} parent=1 // pred_region
      _
    $region25: #{tpu_custom_call.1} parent=1 // pred_fallthru
      _
    // Predicated region
    $region26: #{tpu_custom_call.1} parent=1 // pred_check
      _
    $region27: #{tpu_custom_call.1} parent=1 // pred_check_branch
      %70 = sbr.rel (0) target = $region29
    $region28: #{tpu_custom_call.1} parent=1 // pred_region
      %71 = dma.done [#allocation3], 2048
    $region29: #{tpu_custom_call.1} parent=1 // pred_fallthru
      _
    // Predicated region
    $region30: #{tpu_custom_call.1} parent=1 // pred_check
      _
    $region31: #{tpu_custom_call.1} parent=1 // pred_check_branch
      %73 = sbr.rel (0) target = $region33
    $region32: #{tpu_custom_call.1} parent=1 // pred_region
      %74 = dma.done [#allocation6], 16384
    $region33: #{tpu_custom_call.1} parent=1 // pred_fallthru
      _
    // Predicated region
    $region34: #{tpu_custom_call.1} parent=1 // pred_check
      _
    $region35: #{tpu_custom_call.1} parent=1 // pred_check_branch
      %76 = sbr.rel (0) target = $region37
    $region36: #{tpu_custom_call.1} parent=1 // pred_region
      %77 = dma.done [#allocation6], 8192
    $region37: #{tpu_custom_call.1} parent=1 // pred_fallthru
      _
    // Predicated region
    $region38: #{tpu_custom_call.1} parent=1 // pred_check
      _
    $region39: #{tpu_custom_call.1} parent=1 // pred_check_branch
      %79 = sbr.rel (0) target = $region41
    $region40: #{tpu_custom_call.1} parent=1 // pred_region
      %80 = dma.done [#allocation9], 64
    $region41: #{tpu_custom_call.1} parent=1 // pred_fallthru
      _
    %v81 = vld [vmem:[#allocation2] sm:$0xff]
    %v82 = vld [vmem:[#allocation2 + $0x8] sm:$0xff]
    %v83 = vld [vmem:[#allocation2 + $0x10] sm:$0xff]
    %v84 = vld [vmem:[#allocation2 + $0x18] sm:$0xff]
    %v85 = vld [vmem:[#allocation2 + $0x20] sm:$0xff]
    %v86 = vld [vmem:[#allocation2 + $0x28] sm:$0xff]
    %v87 = vld [vmem:[#allocation2 + $0x30] sm:$0xff]
    %v88 = vld [vmem:[#allocation2 + $0x38] sm:$0xff]
    %v89 = vld [vmem:[#allocation2 + $0x40] sm:$0xff]
    %v90 = vld [vmem:[#allocation2 + $0x48] sm:$0xff]
    %v91 = vld [vmem:[#allocation2 + $0x50] sm:$0xff]
    %v92 = vld [vmem:[#allocation2 + $0x58] sm:$0xff]
    %v93 = vld [vmem:[#allocation2 + $0x60] sm:$0xff]
    %v94 = vld [vmem:[#allocation2 + $0x68] sm:$0xff]
    %v95 = vld [vmem:[#allocation2 + $0x70] sm:$0xff]
    %v96 = vld [vmem:[#allocation2 + $0x78] sm:$0xff]
    %v97 = vld [vmem:[#allocation5] sm:$0xff]
    %v98 = vld [vmem:[#allocation5 + $0x8] sm:$0xff]
    %v99 = vld [vmem:[#allocation5 + $0x10] sm:$0xff]
    %v100 = vld [vmem:[#allocation5 + $0x18] sm:$0xff]
    %v101 = vld [vmem:[#allocation5 + $0x20] sm:$0xff]
    %v102 = vld [vmem:[#allocation5 + $0x28] sm:$0xff]
    %v103 = vld [vmem:[#allocation5 + $0x30] sm:$0xff]
    %v104 = vld [vmem:[#allocation5 + $0x38] sm:$0xff]
    %v105 = vld [vmem:[#allocation5 + $0x40] sm:$0xff]
    %v106 = vld [vmem:[#allocation5 + $0x48] sm:$0xff]
    %v107 = vld [vmem:[#allocation5 + $0x50] sm:$0xff]
    %v108 = vld [vmem:[#allocation5 + $0x58] sm:$0xff]
    %v109 = vld [vmem:[#allocation5 + $0x60] sm:$0xff]
    %v110 = vld [vmem:[#allocation5 + $0x68] sm:$0xff]
    %v111 = vld [vmem:[#allocation5 + $0x70] sm:$0xff]
    %v112 = vld [vmem:[#allocation5 + $0x78] sm:$0xff]
    %v113 = vld [vmem:[#allocation5 + $0x80] sm:$0xff]
    %v114 = vld [vmem:[#allocation5 + $0x88] sm:$0xff]
    %v115 = vld [vmem:[#allocation5 + $0x90] sm:$0xff]
    %v116 = vld [vmem:[#allocation5 + $0x98] sm:$0xff]
    %v117 = vld [vmem:[#allocation5 + $0xa0] sm:$0xff]
    %v118 = vld [vmem:[#allocation5 + $0xa8] sm:$0xff]
    %v119 = vld [vmem:[#allocation5 + $0xb0] sm:$0xff]
    %v120 = vld [vmem:[#allocation5 + $0xb8] sm:$0xff]
    %v121 = vld [vmem:[#allocation5 + $0xc0] sm:$0xff]
    %v122 = vld [vmem:[#allocation5 + $0xc8] sm:$0xff]
    %v123 = vld [vmem:[#allocation5 + $0xd0] sm:$0xff]
    %v124 = vld [vmem:[#allocation5 + $0xd8] sm:$0xff]
    %v125 = vld [vmem:[#allocation5 + $0xe0] sm:$0xff]
    %v126 = vld [vmem:[#allocation5 + $0xe8] sm:$0xff]
    %v127 = vld [vmem:[#allocation5 + $0xf0] sm:$0xff]
    %v128 = vld [vmem:[#allocation5 + $0xf8] sm:$0xff]
    %v129 = vld [vmem:[#allocation5 + $0x100] sm:$0xff]
    %v130 = vld [vmem:[#allocation5 + $0x108] sm:$0xff]
    %v131 = vld [vmem:[#allocation5 + $0x110] sm:$0xff]
    %v132 = vld [vmem:[#allocation5 + $0x118] sm:$0xff]
    %v133 = vld [vmem:[#allocation5 + $0x120] sm:$0xff]
    %v134 = vld [vmem:[#allocation5 + $0x128] sm:$0xff]
    %v135 = vld [vmem:[#allocation5 + $0x130] sm:$0xff]
    %v136 = vld [vmem:[#allocation5 + $0x138] sm:$0xff]
    %v137 = vld [vmem:[#allocation5 + $0x140] sm:$0xff]
    %v138 = vld [vmem:[#allocation5 + $0x148] sm:$0xff]
    %v139 = vld [vmem:[#allocation5 + $0x150] sm:$0xff]
    %v140 = vld [vmem:[#allocation5 + $0x158] sm:$0xff]
    %v141 = vld [vmem:[#allocation5 + $0x160] sm:$0xff]
    %v142 = vld [vmem:[#allocation5 + $0x168] sm:$0xff]
    %v143 = vld [vmem:[#allocation5 + $0x170] sm:$0xff]
    %v144 = vld [vmem:[#allocation5 + $0x178] sm:$0xff]
    %v145 = vld [vmem:[#allocation5 + $0x180] sm:$0xff]
    %v146 = vld [vmem:[#allocation5 + $0x188] sm:$0xff]
    %v147 = vld [vmem:[#allocation5 + $0x190] sm:$0xff]
    %v148 = vld [vmem:[#allocation5 + $0x198] sm:$0xff]
    %v149 = vld [vmem:[#allocation5 + $0x1a0] sm:$0xff]
    %v150 = vld [vmem:[#allocation5 + $0x1a8] sm:$0xff]
    %v151 = vld [vmem:[#allocation5 + $0x1b0] sm:$0xff]
    %v152 = vld [vmem:[#allocation5 + $0x1b8] sm:$0xff]
    %v153 = vld [vmem:[#allocation5 + $0x1c0] sm:$0xff]
    %v154 = vld [vmem:[#allocation5 + $0x1c8] sm:$0xff]
    %v155 = vld [vmem:[#allocation5 + $0x1d0] sm:$0xff]
    %v156 = vld [vmem:[#allocation5 + $0x1d8] sm:$0xff]
    %v157 = vld [vmem:[#allocation5 + $0x1e0] sm:$0xff]
    %v158 = vld [vmem:[#allocation5 + $0x1e8] sm:$0xff]
    %v159 = vld [vmem:[#allocation5 + $0x1f0] sm:$0xff]
    %v160 = vld [vmem:[#allocation5 + $0x1f8] sm:$0xff]
    %v161 = vld [vmem:[#allocation5 + $0x200] sm:$0xff]
    %v162 = vld [vmem:[#allocation5 + $0x208] sm:$0xff]
    %v163 = vld [vmem:[#allocation5 + $0x210] sm:$0xff]
    %v164 = vld [vmem:[#allocation5 + $0x218] sm:$0xff]
    %v165 = vld [vmem:[#allocation5 + $0x220] sm:$0xff]
    %v166 = vld [vmem:[#allocation5 + $0x228] sm:$0xff]
    %v167 = vld [vmem:[#allocation5 + $0x230] sm:$0xff]
    %v168 = vld [vmem:[#allocation5 + $0x238] sm:$0xff]
    %v169 = vld [vmem:[#allocation5 + $0x240] sm:$0xff]
    %v170 = vld [vmem:[#allocation5 + $0x248] sm:$0xff]
    %v171 = vld [vmem:[#allocation5 + $0x250] sm:$0xff]
    %v172 = vld [vmem:[#allocation5 + $0x258] sm:$0xff]
    %v173 = vld [vmem:[#allocation5 + $0x260] sm:$0xff]
    %v174 = vld [vmem:[#allocation5 + $0x268] sm:$0xff]
    %v175 = vld [vmem:[#allocation5 + $0x270] sm:$0xff]
    %v176 = vld [vmem:[#allocation5 + $0x278] sm:$0xff]
    %v177 = vld [vmem:[#allocation5 + $0x280] sm:$0xff]
    %v178 = vld [vmem:[#allocation5 + $0x288] sm:$0xff]
    %v179 = vld [vmem:[#allocation5 + $0x290] sm:$0xff]
    %v180 = vld [vmem:[#allocation5 + $0x298] sm:$0xff]
    %v181 = vld [vmem:[#allocation5 + $0x2a0] sm:$0xff]
    %v182 = vld [vmem:[#allocation5 + $0x2a8] sm:$0xff]
    %v183 = vld [vmem:[#allocation5 + $0x2b0] sm:$0xff]
    %v184 = vld [vmem:[#allocation5 + $0x2b8] sm:$0xff]
    %v185 = vld [vmem:[#allocation5 + $0x2c0] sm:$0xff]
    %v186 = vld [vmem:[#allocation5 + $0x2c8] sm:$0xff]
    %v187 = vld [vmem:[#allocation5 + $0x2d0] sm:$0xff]
    %v188 = vld [vmem:[#allocation5 + $0x2d8] sm:$0xff]
    %v189 = vld [vmem:[#allocation5 + $0x2e0] sm:$0xff]
    %v190 = vld [vmem:[#allocation5 + $0x2e8] sm:$0xff]
    %v191 = vld [vmem:[#allocation5 + $0x2f0] sm:$0xff]
    %v192 = vld [vmem:[#allocation5 + $0x2f8] sm:$0xff]
    %v193 = vld [vmem:[#allocation5 + $0x300] sm:$0xff]
    %v194 = vld [vmem:[#allocation5 + $0x308] sm:$0xff]
    %v195 = vld [vmem:[#allocation5 + $0x310] sm:$0xff]
    %v196 = vld [vmem:[#allocation5 + $0x318] sm:$0xff]
    %v197 = vld [vmem:[#allocation5 + $0x320] sm:$0xff]
    %v198 = vld [vmem:[#allocation5 + $0x328] sm:$0xff]
    %v199 = vld [vmem:[#allocation5 + $0x330] sm:$0xff]
    %v200 = vld [vmem:[#allocation5 + $0x338] sm:$0xff]
    %v201 = vld [vmem:[#allocation5 + $0x340] sm:$0xff]
    %v202 = vld [vmem:[#allocation5 + $0x348] sm:$0xff]
    %v203 = vld [vmem:[#allocation5 + $0x350] sm:$0xff]
    %v204 = vld [vmem:[#allocation5 + $0x358] sm:$0xff]
    %v205 = vld [vmem:[#allocation5 + $0x360] sm:$0xff]
    %v206 = vld [vmem:[#allocation5 + $0x368] sm:$0xff]
    %v207 = vld [vmem:[#allocation5 + $0x370] sm:$0xff]
    %v208 = vld [vmem:[#allocation5 + $0x378] sm:$0xff]
    %v209 = vld [vmem:[#allocation5 + $0x380] sm:$0xff]
    %v210 = vld [vmem:[#allocation5 + $0x388] sm:$0xff]
    %v211 = vld [vmem:[#allocation5 + $0x390] sm:$0xff]
    %v212 = vld [vmem:[#allocation5 + $0x398] sm:$0xff]
    %v213 = vld [vmem:[#allocation5 + $0x3a0] sm:$0xff]
    %v214 = vld [vmem:[#allocation5 + $0x3a8] sm:$0xff]
    %v215 = vld [vmem:[#allocation5 + $0x3b0] sm:$0xff]
    %v216 = vld [vmem:[#allocation5 + $0x3b8] sm:$0xff]
    %v217 = vld [vmem:[#allocation5 + $0x3c0] sm:$0xff]
    %v218 = vld [vmem:[#allocation5 + $0x3c8] sm:$0xff]
    %v219 = vld [vmem:[#allocation5 + $0x3d0] sm:$0xff]
    %v220 = vld [vmem:[#allocation5 + $0x3d8] sm:$0xff]
    %v221 = vld [vmem:[#allocation5 + $0x3e0] sm:$0xff]
    %v222 = vld [vmem:[#allocation5 + $0x3e8] sm:$0xff]
    %v223 = vld [vmem:[#allocation5 + $0x3f0] sm:$0xff]
    %v224 = vld [vmem:[#allocation5 + $0x3f8] sm:$0xff]
    %v225 = vld [vmem:[#allocation8] sm:$0xf]
    %v227 = vlaneseq
    %v228 = vshrl.u32 %v227, 7
    %v229 = vsub.s32 0, %v228
    %v230 = vrot.slane %v225, %v229
    %v231 = vlaneseq
    %v232 = vshrl.u32 %v231, 7
    %v233 = vsub.s32 1, %v232
    %v234 = vrot.slane %v225, %v233
    %v235 = vlaneseq
    %v236 = vshrl.u32 %v235, 7
    %v237 = vsub.s32 2, %v236
    %v238 = vrot.slane %v225, %v237
    %v239 = vlaneseq
    %v240 = vshrl.u32 %v239, 7
    %v241 = vsub.s32 3, %v240
    %v242 = vrot.slane %v225, %v241
    %247 = vmatprep.subr.mxu0 %v98
    %248 = vmatpush1.msra.mxu0 %v97
    %249 = vmatprep.subr.mxu0 %v102
    %250 = vmatpush1.msra.mxu0 %v101
    %251 = vmatprep.subr.mxu0 %v106
    %252 = vmatpush1.msra.mxu0 %v105
    %253 = vmatprep.subr.mxu0 %v110
    %254 = vmatpush1.msra.mxu0 %v109
    %255 = vmatprep.subr.mxu0 %v114
    %256 = vmatpush1.msra.mxu0 %v113
    %257 = vmatprep.subr.mxu0 %v118
    %258 = vmatpush1.msra.mxu0 %v117
    %259 = vmatprep.subr.mxu0 %v122
    %260 = vmatpush1.msra.mxu0 %v121
    %261 = vmatprep.subr.mxu0 %v126
    %262 = vmatpush1.msra.mxu0 %v125
    %263 = vmatprep.subr.mxu0 %v130
    %264 = vmatpush1.msra.mxu0 %v129
    %265 = vmatprep.subr.mxu0 %v134
    %266 = vmatpush1.msra.mxu0 %v133
    %267 = vmatprep.subr.mxu0 %v138
    %268 = vmatpush1.msra.mxu0 %v137
    %269 = vmatprep.subr.mxu0 %v142
    %270 = vmatpush1.msra.mxu0 %v141
    %271 = vmatprep.subr.mxu0 %v146
    %272 = vmatpush1.msra.mxu0 %v145
    %273 = vmatprep.subr.mxu0 %v150
    %274 = vmatpush1.msra.mxu0 %v149
    %275 = vmatprep.subr.mxu0 %v154
    %276 = vmatpush1.msra.mxu0 %v153
    %277 = vmatprep.subr.mxu0 %v158
    %278 = vmatpush1.msra.mxu0 %v157
    %279 = vmatprep.subr.mxu0 %v162
    %280 = vmatpush1.msra.mxu0 %v161
    %281 = vmatprep.subr.mxu0 %v166
    %282 = vmatpush1.msra.mxu0 %v165
    %283 = vmatprep.subr.mxu0 %v170
    %284 = vmatpush1.msra.mxu0 %v169
    %285 = vmatprep.subr.mxu0 %v174
    %286 = vmatpush1.msra.mxu0 %v173
    %287 = vmatprep.subr.mxu0 %v178
    %288 = vmatpush1.msra.mxu0 %v177
    %289 = vmatprep.subr.mxu0 %v182
    %290 = vmatpush1.msra.mxu0 %v181
    %291 = vmatprep.subr.mxu0 %v186
    %292 = vmatpush1.msra.mxu0 %v185
    %293 = vmatprep.subr.mxu0 %v190
    %294 = vmatpush1.msra.mxu0 %v189
    %295 = vmatprep.subr.mxu0 %v194
    %296 = vmatpush1.msra.mxu0 %v193
    %297 = vmatprep.subr.mxu0 %v198
    %298 = vmatpush1.msra.mxu0 %v197
    %299 = vmatprep.subr.mxu0 %v202
    %300 = vmatpush1.msra.mxu0 %v201
    %301 = vmatprep.subr.mxu0 %v206
    %302 = vmatpush1.msra.mxu0 %v205
    %303 = vmatprep.subr.mxu0 %v210
    %304 = vmatpush1.msra.mxu0 %v209
    %305 = vmatprep.subr.mxu0 %v214
    %306 = vmatpush1.msra.mxu0 %v213
    %307 = vmatprep.subr.mxu0 %v218
    %308 = vmatpush1.msra.mxu0 %v217
    %309 = vmatprep.subr.mxu0 %v222
    %310 = vmatpush1.msra.mxu0 %v221
    %311 = vmatprep.mubr.f32.mxu0 %v82
    %312 = vmatmul.mubr.f32.gmra.mrb[0].mxu0 %v81
    %v313 = vpop.f32.mrb[0].mxu0
    %v314 = vadd.f32 %v230, %v313
    %v315 = vpop.f32.mrb[0].mxu0
    %v316 = vadd.f32 %v234, %v315
    %317 = vmatprep.mubr.f32.mxu0 %v84
    %318 = vmatmul.mubr.f32.gmra.mrb[0].mxu0 %v83
    %v319 = vpop.f32.mrb[0].mxu0
    %v320 = vadd.f32 %v230, %v319
    %v321 = vpop.f32.mrb[0].mxu0
    %v322 = vadd.f32 %v234, %v321
    %323 = vmatprep.mubr.f32.mxu0 %v86
    %324 = vmatmul.mubr.f32.gmra.mrb[0].mxu0 %v85
    %v325 = vpop.f32.mrb[0].mxu0
    %v326 = vadd.f32 %v230, %v325
    %v327 = vpop.f32.mrb[0].mxu0
    %v328 = vadd.f32 %v234, %v327
    %329 = vmatprep.mubr.f32.mxu0 %v88
    %330 = vmatmul.mubr.f32.gmra.mrb[0].mxu0 %v87
    %v331 = vpop.f32.mrb[0].mxu0
    %v332 = vadd.f32 %v230, %v331
    %v333 = vpop.f32.mrb[0].mxu0
    %v334 = vadd.f32 %v234, %v333
    %335 = vmatprep.mubr.f32.mxu0 %v90
    %336 = vmatmul.mubr.f32.gmra.mrb[0].mxu0 %v89
    %v337 = vpop.f32.mrb[0].mxu0
    %v338 = vadd.f32 %v230, %v337
    %v339 = vpop.f32.mrb[0].mxu0
    %v340 = vadd.f32 %v234, %v339
    %341 = vmatprep.mubr.f32.mxu0 %v92
    %342 = vmatmul.mubr.f32.gmra.mrb[0].mxu0 %v91
    %v343 = vpop.f32.mrb[0].mxu0
    %v344 = vadd.f32 %v230, %v343
    %v345 = vpop.f32.mrb[0].mxu0
    %v346 = vadd.f32 %v234, %v345
    %347 = vmatprep.mubr.f32.mxu0 %v94
    %348 = vmatmul.mubr.f32.gmra.mrb[0].mxu0 %v93
    %v349 = vpop.f32.mrb[0].mxu0
    %v350 = vadd.f32 %v230, %v349
    %v351 = vpop.f32.mrb[0].mxu0
    %v352 = vadd.f32 %v234, %v351
    %353 = vmatprep.mubr.f32.mxu0 %v96
    %354 = vmatmul.mubr.f32.gmra.mrb[0].mxu0 %v95
    %v355 = vpop.f32.mrb[0].mxu0
    %v356 = vadd.f32 %v230, %v355
    %v357 = vpop.f32.mrb[0].mxu0
    %v358 = vadd.f32 %v234, %v357
    %359 = vdwg.mxu0
    %360 = vmatprep.subr.mxu0 %v100
    %361 = vmatpush1.msra.mxu0 %v99
    %362 = vmatprep.subr.mxu0 %v104
    %363 = vmatpush1.msra.mxu0 %v103
    %364 = vmatprep.subr.mxu0 %v108
    %365 = vmatpush1.msra.mxu0 %v107
    %366 = vmatprep.subr.mxu0 %v112
    %367 = vmatpush1.msra.mxu0 %v111
    %368 = vmatprep.subr.mxu0 %v116
    %369 = vmatpush1.msra.mxu0 %v115
    %370 = vmatprep.subr.mxu0 %v120
    %371 = vmatpush1.msra.mxu0 %v119
    %372 = vmatprep.subr.mxu0 %v124
    %373 = vmatpush1.msra.mxu0 %v123
    %374 = vmatprep.subr.mxu0 %v128
    %375 = vmatpush1.msra.mxu0 %v127
    %376 = vmatprep.subr.mxu0 %v132
    %377 = vmatpush1.msra.mxu0 %v131
    %378 = vmatprep.subr.mxu0 %v136
    %379 = vmatpush1.msra.mxu0 %v135
    %380 = vmatprep.subr.mxu0 %v140
    %381 = vmatpush1.msra.mxu0 %v139
    %382 = vmatprep.subr.mxu0 %v144
    %383 = vmatpush1.msra.mxu0 %v143
    %384 = vmatprep.subr.mxu0 %v148
    %385 = vmatpush1.msra.mxu0 %v147
    %386 = vmatprep.subr.mxu0 %v152
    %387 = vmatpush1.msra.mxu0 %v151
    %388 = vmatprep.subr.mxu0 %v156
    %389 = vmatpush1.msra.mxu0 %v155
    %390 = vmatprep.subr.mxu0 %v160
    %391 = vmatpush1.msra.mxu0 %v159
    %392 = vmatprep.subr.mxu0 %v164
    %393 = vmatpush1.msra.mxu0 %v163
    %394 = vmatprep.subr.mxu0 %v168
    %395 = vmatpush1.msra.mxu0 %v167
    %396 = vmatprep.subr.mxu0 %v172
    %397 = vmatpush1.msra.mxu0 %v171
    %398 = vmatprep.subr.mxu0 %v176
    %399 = vmatpush1.msra.mxu0 %v175
    %400 = vmatprep.subr.mxu0 %v180
    %401 = vmatpush1.msra.mxu0 %v179
    %402 = vmatprep.subr.mxu0 %v184
    %403 = vmatpush1.msra.mxu0 %v183
    %404 = vmatprep.subr.mxu0 %v188
    %405 = vmatpush1.msra.mxu0 %v187
    %406 = vmatprep.subr.mxu0 %v192
    %407 = vmatpush1.msra.mxu0 %v191
    %408 = vmatprep.subr.mxu0 %v196
    %409 = vmatpush1.msra.mxu0 %v195
    %410 = vmatprep.subr.mxu0 %v200
    %411 = vmatpush1.msra.mxu0 %v199
    %412 = vmatprep.subr.mxu0 %v204
    %413 = vmatpush1.msra.mxu0 %v203
    %414 = vmatprep.subr.mxu0 %v208
    %415 = vmatpush1.msra.mxu0 %v207
    %416 = vmatprep.subr.mxu0 %v212
    %417 = vmatpush1.msra.mxu0 %v211
    %418 = vmatprep.subr.mxu0 %v216
    %419 = vmatpush1.msra.mxu0 %v215
    %420 = vmatprep.subr.mxu0 %v220
    %421 = vmatpush1.msra.mxu0 %v219
    %422 = vmatprep.subr.mxu0 %v224
    %423 = vmatpush1.msra.mxu0 %v223
    %424 = vmatprep.mubr.f32.mxu0 %v82
    %425 = vmatmul.mubr.f32.gmra.mrb[0].mxu0 %v81
    %v426 = vpop.f32.mrb[0].mxu0
    %v427 = vadd.f32 %v238, %v426
    %v428 = vpop.f32.mrb[0].mxu0
    %v429 = vadd.f32 %v242, %v428
    %430 = vmatprep.mubr.f32.mxu0 %v84
    %431 = vmatmul.mubr.f32.gmra.mrb[0].mxu0 %v83
    %v432 = vpop.f32.mrb[0].mxu0
    %v433 = vadd.f32 %v238, %v432
    %v434 = vpop.f32.mrb[0].mxu0
    %v435 = vadd.f32 %v242, %v434
    %436 = vmatprep.mubr.f32.mxu0 %v86
    %437 = vmatmul.mubr.f32.gmra.mrb[0].mxu0 %v85
    %v438 = vpop.f32.mrb[0].mxu0
    %v439 = vadd.f32 %v238, %v438
    %v440 = vpop.f32.mrb[0].mxu0
    %v441 = vadd.f32 %v242, %v440
    %442 = vmatprep.mubr.f32.mxu0 %v88
    %443 = vmatmul.mubr.f32.gmra.mrb[0].mxu0 %v87
    %v444 = vpop.f32.mrb[0].mxu0
    %v445 = vadd.f32 %v238, %v444
    %v446 = vpop.f32.mrb[0].mxu0
    %v447 = vadd.f32 %v242, %v446
    %448 = vmatprep.mubr.f32.mxu0 %v90
    %449 = vmatmul.mubr.f32.gmra.mrb[0].mxu0 %v89
    %v450 = vpop.f32.mrb[0].mxu0
    %v451 = vadd.f32 %v238, %v450
    %v452 = vpop.f32.mrb[0].mxu0
    %v453 = vadd.f32 %v242, %v452
    %454 = vmatprep.mubr.f32.mxu0 %v92
    %455 = vmatmul.mubr.f32.gmra.mrb[0].mxu0 %v91
    %v456 = vpop.f32.mrb[0].mxu0
    %v457 = vadd.f32 %v238, %v456
    %v458 = vpop.f32.mrb[0].mxu0
    %v459 = vadd.f32 %v242, %v458
    %460 = vmatprep.mubr.f32.mxu0 %v94
    %461 = vmatmul.mubr.f32.gmra.mrb[0].mxu0 %v93
    %v462 = vpop.f32.mrb[0].mxu0
    %v463 = vadd.f32 %v238, %v462
    %v464 = vpop.f32.mrb[0].mxu0
    %v465 = vadd.f32 %v242, %v464
    %466 = vmatprep.mubr.f32.mxu0 %v96
    %467 = vmatmul.mubr.f32.gmra.mrb[0].mxu0 %v95
    %v468 = vpop.f32.mrb[0].mxu0
    %v469 = vadd.f32 %v238, %v468
    %v470 = vpop.f32.mrb[0].mxu0
    %v471 = vadd.f32 %v242, %v470
    %472 = vdwg.mxu0
    %v473 = vld [vmem:[#allocation7] sm:$0xff]
    %v474 = vld [vmem:[#allocation7 + $0x8] sm:$0xff]
    %v475 = vld [vmem:[#allocation7 + $0x10] sm:$0xff]
    %v476 = vld [vmem:[#allocation7 + $0x18] sm:$0xff]
    %v477 = vld [vmem:[#allocation7 + $0x20] sm:$0xff]
    %v478 = vld [vmem:[#allocation7 + $0x28] sm:$0xff]
    %v479 = vld [vmem:[#allocation7 + $0x30] sm:$0xff]
    %v480 = vld [vmem:[#allocation7 + $0x38] sm:$0xff]
    %v481 = vld [vmem:[#allocation7 + $0x40] sm:$0xff]
    %v482 = vld [vmem:[#allocation7 + $0x48] sm:$0xff]
    %v483 = vld [vmem:[#allocation7 + $0x50] sm:$0xff]
    %v484 = vld [vmem:[#allocation7 + $0x58] sm:$0xff]
    %v485 = vld [vmem:[#allocation7 + $0x60] sm:$0xff]
    %v486 = vld [vmem:[#allocation7 + $0x68] sm:$0xff]
    %v487 = vld [vmem:[#allocation7 + $0x70] sm:$0xff]
    %v488 = vld [vmem:[#allocation7 + $0x78] sm:$0xff]
    %v489 = vld [vmem:[#allocation7 + $0x80] sm:$0xff]
    %v490 = vld [vmem:[#allocation7 + $0x88] sm:$0xff]
    %v491 = vld [vmem:[#allocation7 + $0x90] sm:$0xff]
    %v492 = vld [vmem:[#allocation7 + $0x98] sm:$0xff]
    %v493 = vld [vmem:[#allocation7 + $0xa0] sm:$0xff]
    %v494 = vld [vmem:[#allocation7 + $0xa8] sm:$0xff]
    %v495 = vld [vmem:[#allocation7 + $0xb0] sm:$0xff]
    %v496 = vld [vmem:[#allocation7 + $0xb8] sm:$0xff]
    %v497 = vld [vmem:[#allocation7 + $0xc0] sm:$0xff]
    %v498 = vld [vmem:[#allocation7 + $0xc8] sm:$0xff]
    %v499 = vld [vmem:[#allocation7 + $0xd0] sm:$0xff]
    %v500 = vld [vmem:[#allocation7 + $0xd8] sm:$0xff]
    %v501 = vld [vmem:[#allocation7 + $0xe0] sm:$0xff]
    %v502 = vld [vmem:[#allocation7 + $0xe8] sm:$0xff]
    %v503 = vld [vmem:[#allocation7 + $0xf0] sm:$0xff]
    %v504 = vld [vmem:[#allocation7 + $0xf8] sm:$0xff]
    %v505 = vld [vmem:[#allocation7 + $0x100] sm:$0xff]
    %v506 = vld [vmem:[#allocation7 + $0x108] sm:$0xff]
    %v507 = vld [vmem:[#allocation7 + $0x110] sm:$0xff]
    %v508 = vld [vmem:[#allocation7 + $0x118] sm:$0xff]
    %v509 = vld [vmem:[#allocation7 + $0x120] sm:$0xff]
    %v510 = vld [vmem:[#allocation7 + $0x128] sm:$0xff]
    %v511 = vld [vmem:[#allocation7 + $0x130] sm:$0xff]
    %v512 = vld [vmem:[#allocation7 + $0x138] sm:$0xff]
    %v513 = vld [vmem:[#allocation7 + $0x140] sm:$0xff]
    %v514 = vld [vmem:[#allocation7 + $0x148] sm:$0xff]
    %v515 = vld [vmem:[#allocation7 + $0x150] sm:$0xff]
    %v516 = vld [vmem:[#allocation7 + $0x158] sm:$0xff]
    %v517 = vld [vmem:[#allocation7 + $0x160] sm:$0xff]
    %v518 = vld [vmem:[#allocation7 + $0x168] sm:$0xff]
    %v519 = vld [vmem:[#allocation7 + $0x170] sm:$0xff]
    %v520 = vld [vmem:[#allocation7 + $0x178] sm:$0xff]
    %v521 = vld [vmem:[#allocation7 + $0x180] sm:$0xff]
    %v522 = vld [vmem:[#allocation7 + $0x188] sm:$0xff]
    %v523 = vld [vmem:[#allocation7 + $0x190] sm:$0xff]
    %v524 = vld [vmem:[#allocation7 + $0x198] sm:$0xff]
    %v525 = vld [vmem:[#allocation7 + $0x1a0] sm:$0xff]
    %v526 = vld [vmem:[#allocation7 + $0x1a8] sm:$0xff]
    %v527 = vld [vmem:[#allocation7 + $0x1b0] sm:$0xff]
    %v528 = vld [vmem:[#allocation7 + $0x1b8] sm:$0xff]
    %v529 = vld [vmem:[#allocation7 + $0x1c0] sm:$0xff]
    %v530 = vld [vmem:[#allocation7 + $0x1c8] sm:$0xff]
    %v531 = vld [vmem:[#allocation7 + $0x1d0] sm:$0xff]
    %v532 = vld [vmem:[#allocation7 + $0x1d8] sm:$0xff]
    %v533 = vld [vmem:[#allocation7 + $0x1e0] sm:$0xff]
    %v534 = vld [vmem:[#allocation7 + $0x1e8] sm:$0xff]
    %v535 = vld [vmem:[#allocation7 + $0x1f0] sm:$0xff]
    %v536 = vld [vmem:[#allocation7 + $0x1f8] sm:$0xff]
    %v537 = vld [vmem:[%s4] sm:$0xff]
    %v538 = vld [vmem:[%s5] sm:$0xff]
    %539 = vmatprep.subr.mxu0 %v474
    %540 = vmatpush1.msra.mxu0 %v473
    %541 = vmatprep.subr.mxu0 %v478
    %542 = vmatpush1.msra.mxu0 %v477
    %543 = vmatprep.subr.mxu0 %v482
    %544 = vmatpush1.msra.mxu0 %v481
    %545 = vmatprep.subr.mxu0 %v486
    %546 = vmatpush1.msra.mxu0 %v485
    %547 = vmatprep.subr.mxu0 %v490
    %548 = vmatpush1.msra.mxu0 %v489
    %549 = vmatprep.subr.mxu0 %v494
    %550 = vmatpush1.msra.mxu0 %v493
    %551 = vmatprep.subr.mxu0 %v498
    %552 = vmatpush1.msra.mxu0 %v497
    %553 = vmatprep.subr.mxu0 %v502
    %554 = vmatpush1.msra.mxu0 %v501
    %555 = vmatprep.subr.mxu0 %v506
    %556 = vmatpush1.msra.mxu0 %v505
    %557 = vmatprep.subr.mxu0 %v510
    %558 = vmatpush1.msra.mxu0 %v509
    %559 = vmatprep.subr.mxu0 %v514
    %560 = vmatpush1.msra.mxu0 %v513
    %561 = vmatprep.subr.mxu0 %v518
    %562 = vmatpush1.msra.mxu0 %v517
    %563 = vmatprep.subr.mxu0 %v522
    %564 = vmatpush1.msra.mxu0 %v521
    %565 = vmatprep.subr.mxu0 %v526
    %566 = vmatpush1.msra.mxu0 %v525
    %567 = vmatprep.subr.mxu0 %v530
    %568 = vmatpush1.msra.mxu0 %v529
    %569 = vmatprep.subr.mxu0 %v534
    %570 = vmatpush1.msra.mxu0 %v533
    %571 = vmatprep.subr.mxu0 0.0
    %572 = vmatpush1.msra.mxu0 0.0
    %573 = vmatprep.subr.mxu0 0.0
    %574 = vmatpush1.msra.mxu0 0.0
    %575 = vmatprep.subr.mxu0 0.0
    %576 = vmatpush1.msra.mxu0 0.0
    %577 = vmatprep.subr.mxu0 0.0
    %578 = vmatpush1.msra.mxu0 0.0
    %579 = vmatprep.subr.mxu0 0.0
    %580 = vmatpush1.msra.mxu0 0.0
    %581 = vmatprep.subr.mxu0 0.0
    %582 = vmatpush1.msra.mxu0 0.0
    %583 = vmatprep.subr.mxu0 0.0
    %584 = vmatpush1.msra.mxu0 0.0
    %585 = vmatprep.subr.mxu0 0.0
    %586 = vmatpush1.msra.mxu0 0.0
    %587 = vmatprep.subr.mxu0 0.0
    %588 = vmatpush1.msra.mxu0 0.0
    %589 = vmatprep.subr.mxu0 0.0
    %590 = vmatpush1.msra.mxu0 0.0
    %591 = vmatprep.subr.mxu0 0.0
    %592 = vmatpush1.msra.mxu0 0.0
    %593 = vmatprep.subr.mxu0 0.0
    %594 = vmatpush1.msra.mxu0 0.0
    %595 = vmatprep.subr.mxu0 0.0
    %596 = vmatpush1.msra.mxu0 0.0
    %597 = vmatprep.subr.mxu0 0.0
    %598 = vmatpush1.msra.mxu0 0.0
    %599 = vmatprep.subr.mxu0 0.0
    %600 = vmatpush1.msra.mxu0 0.0
    %601 = vmatprep.subr.mxu0 0.0
    %602 = vmatpush1.msra.mxu0 0.0
    %603 = vmatprep.mubr.f32.mxu0 0.0
    %604 = vmatmul.mubr.f32.gmra.mrb[0].mxu0 %v537
    %v605 = vpop.f32.mrb[0].mxu0
    %v606 = vadd.f32 0.0, %v605
    %v607 = vpop.f32.mrb[0].mxu0
    %v608 = vadd.f32 0.0, %v607
    %609 = vdwg.mxu0
    %610 = vmatprep.subr.mxu0 %v476
    %611 = vmatpush1.msra.mxu0 %v475
    %612 = vmatprep.subr.mxu0 %v480
    %613 = vmatpush1.msra.mxu0 %v479
    %614 = vmatprep.subr.mxu0 %v484
    %615 = vmatpush1.msra.mxu0 %v483
    %616 = vmatprep.subr.mxu0 %v488
    %617 = vmatpush1.msra.mxu0 %v487
    %618 = vmatprep.subr.mxu0 %v492
    %619 = vmatpush1.msra.mxu0 %v491
    %620 = vmatprep.subr.mxu0 %v496
    %621 = vmatpush1.msra.mxu0 %v495
    %622 = vmatprep.subr.mxu0 %v500
    %623 = vmatpush1.msra.mxu0 %v499
    %624 = vmatprep.subr.mxu0 %v504
    %625 = vmatpush1.msra.mxu0 %v503
    %626 = vmatprep.subr.mxu0 %v508
    %627 = vmatpush1.msra.mxu0 %v507
    %628 = vmatprep.subr.mxu0 %v512
    %629 = vmatpush1.msra.mxu0 %v511
    %630 = vmatprep.subr.mxu0 %v516
    %631 = vmatpush1.msra.mxu0 %v515
    %632 = vmatprep.subr.mxu0 %v520
    %633 = vmatpush1.msra.mxu0 %v519
    %634 = vmatprep.subr.mxu0 %v524
    %635 = vmatpush1.msra.mxu0 %v523
    %636 = vmatprep.subr.mxu0 %v528
    %637 = vmatpush1.msra.mxu0 %v527
    %638 = vmatprep.subr.mxu0 %v532
    %639 = vmatpush1.msra.mxu0 %v531
    %640 = vmatprep.subr.mxu0 %v536
    %641 = vmatpush1.msra.mxu0 %v535
    %642 = vmatprep.subr.mxu0 0.0
    %643 = vmatpush1.msra.mxu0 0.0
    %644 = vmatprep.subr.mxu0 0.0
    %645 = vmatpush1.msra.mxu0 0.0
    %646 = vmatprep.subr.mxu0 0.0
    %647 = vmatpush1.msra.mxu0 0.0
    %648 = vmatprep.subr.mxu0 0.0
    %649 = vmatpush1.msra.mxu0 0.0
    %650 = vmatprep.subr.mxu0 0.0
    %651 = vmatpush1.msra.mxu0 0.0
    %652 = vmatprep.subr.mxu0 0.0
    %653 = vmatpush1.msra.mxu0 0.0
    %654 = vmatprep.subr.mxu0 0.0
    %655 = vmatpush1.msra.mxu0 0.0
    %656 = vmatprep.subr.mxu0 0.0
    %657 = vmatpush1.msra.mxu0 0.0
    %658 = vmatprep.subr.mxu0 0.0
    %659 = vmatpush1.msra.mxu0 0.0
    %660 = vmatprep.subr.mxu0 0.0
    %661 = vmatpush1.msra.mxu0 0.0
    %662 = vmatprep.subr.mxu0 0.0
    %663 = vmatpush1.msra.mxu0 0.0
    %664 = vmatprep.subr.mxu0 0.0
    %665 = vmatpush1.msra.mxu0 0.0
    %666 = vmatprep.subr.mxu0 0.0
    %667 = vmatpush1.msra.mxu0 0.0
    %668 = vmatprep.subr.mxu0 0.0
    %669 = vmatpush1.msra.mxu0 0.0
    %670 = vmatprep.subr.mxu0 0.0
    %671 = vmatpush1.msra.mxu0 0.0
    %672 = vmatprep.subr.mxu0 0.0
    %673 = vmatpush1.msra.mxu0 0.0
    %674 = vmatprep.mubr.f32.mxu0 0.0
    %675 = vmatmul.mubr.f32.gmra.mrb[0].mxu0 %v537
    %v676 = vpop.f32.mrb[0].mxu0
    %v677 = vadd.f32 0.0, %v676
    %v678 = vpop.f32.mrb[0].mxu0
    %v679 = vadd.f32 0.0, %v678
    %680 = vdwg.mxu0
    %v681 = vadd.f32 %v314, %v606
    %v682 = vadd.f32 %v316, %v608
    %v683 = vadd.f32 %v427, %v677
    %v684 = vadd.f32 %v429, %v679
    %v685 = vxor.u32 %v681, 2147483648
    %v686 = vmul.f32 %v685, 1.442695
    %v687 = vpow.pop %v686
    %v688 = vadd.f32 %v687, 1.0
    %v689 = vrcp.pop %v688
    %v690 = vmul.f32 1.0, %v689
    %v691 = vxor.u32 %v682, 2147483648
    %v692 = vmul.f32 %v691, 1.442695
    %v693 = vpow.pop %v692
    %v694 = vadd.f32 %v693, 1.0
    %v695 = vrcp.pop %v694
    %v696 = vmul.f32 1.0, %v695
    %v697 = vtanh.pop %v683
    %v698 = vxor.u32 %v684, 2147483648
    %v699 = vmul.f32 %v698, 1.442695
    %v700 = vpow.pop %v699
    %v701 = vadd.f32 %v700, 1.0
    %v702 = vrcp.pop %v701
    %v703 = vmul.f32 1.0, %v702
    %v704 = vmul.f32 %v696, %v538
    %v705 = vmul.f32 %v690, %v697
    %v706 = vadd.f32 %v704, %v705
    %v707 = vtanh.pop %v706
    %v708 = vmul.f32 %v703, %v707
    %709 = vst [vmem:[#allocation10] sm:$0xff] %v708
    %710 = vmatprep.subr.mxu0 %v474
    %711 = vmatpush1.msra.mxu0 %v473
    %712 = vmatprep.subr.mxu0 %v478
    %713 = vmatpush1.msra.mxu0 %v477
    %714 = vmatprep.subr.mxu0 %v482
    %715 = vmatpush1.msra.mxu0 %v481
    %716 = vmatprep.subr.mxu0 %v486
    %717 = vmatpush1.msra.mxu0 %v485
    %718 = vmatprep.subr.mxu0 %v490
    %719 = vmatpush1.msra.mxu0 %v489
    %720 = vmatprep.subr.mxu0 %v494
    %721 = vmatpush1.msra.mxu0 %v493
    %722 = vmatprep.subr.mxu0 %v498
    %723 = vmatpush1.msra.mxu0 %v497
    %724 = vmatprep.subr.mxu0 %v502
    %725 = vmatpush1.msra.mxu0 %v501
    %726 = vmatprep.subr.mxu0 %v506
    %727 = vmatpush1.msra.mxu0 %v505
    %728 = vmatprep.subr.mxu0 %v510
    %729 = vmatpush1.msra.mxu0 %v509
    %730 = vmatprep.subr.mxu0 %v514
    %731 = vmatpush1.msra.mxu0 %v513
    %732 = vmatprep.subr.mxu0 %v518
    %733 = vmatpush1.msra.mxu0 %v517
    %734 = vmatprep.subr.mxu0 %v522
    %735 = vmatpush1.msra.mxu0 %v521
    %736 = vmatprep.subr.mxu0 %v526
    %737 = vmatpush1.msra.mxu0 %v525
    %738 = vmatprep.subr.mxu0 %v530
    %739 = vmatpush1.msra.mxu0 %v529
    %740 = vmatprep.subr.mxu0 %v534
    %741 = vmatpush1.msra.mxu0 %v533
    %742 = vmatprep.subr.mxu0 0.0
    %743 = vmatpush1.msra.mxu0 0.0
    %744 = vmatprep.subr.mxu0 0.0
    %745 = vmatpush1.msra.mxu0 0.0
    %746 = vmatprep.subr.mxu0 0.0
    %747 = vmatpush1.msra.mxu0 0.0
    %748 = vmatprep.subr.mxu0 0.0
    %749 = vmatpush1.msra.mxu0 0.0
    %750 = vmatprep.subr.mxu0 0.0
    %751 = vmatpush1.msra.mxu0 0.0
    %752 = vmatprep.subr.mxu0 0.0
    %753 = vmatpush1.msra.mxu0 0.0
    %754 = vmatprep.subr.mxu0 0.0
    %755 = vmatpush1.msra.mxu0 0.0
    %756 = vmatprep.subr.mxu0 0.0
    %757 = vmatpush1.msra.mxu0 0.0
    %758 = vmatprep.subr.mxu0 0.0
    %759 = vmatpush1.msra.mxu0 0.0
    %760 = vmatprep.subr.mxu0 0.0
    %761 = vmatpush1.msra.mxu0 0.0
    %762 = vmatprep.subr.mxu0 0.0
    %763 = vmatpush1.msra.mxu0 0.0
    %764 = vmatprep.subr.mxu0 0.0
    %765 = vmatpush1.msra.mxu0 0.0
    %766 = vmatprep.subr.mxu0 0.0
    %767 = vmatpush1.msra.mxu0 0.0
    %768 = vmatprep.subr.mxu0 0.0
    %769 = vmatpush1.msra.mxu0 0.0
    %770 = vmatprep.subr.mxu0 0.0
    %771 = vmatpush1.msra.mxu0 0.0
    %772 = vmatprep.subr.mxu0 0.0
    %773 = vmatpush1.msra.mxu0 0.0
    %774 = vmatprep.mubr.f32.mxu0 0.0
    %775 = vmatmul.mubr.f32.gmra.mrb[0].mxu0 %v708
    %v776 = vpop.f32.mrb[0].mxu0
    %v777 = vadd.f32 0.0, %v776
    %v778 = vpop.f32.mrb[0].mxu0
    %v779 = vadd.f32 0.0, %v778
    %780 = vdwg.mxu0
    %781 = vmatprep.subr.mxu0 %v476
    %782 = vmatpush1.msra.mxu0 %v475
    %783 = vmatprep.subr.mxu0 %v480
    %784 = vmatpush1.msra.mxu0 %v479
    %785 = vmatprep.subr.mxu0 %v484
    %786 = vmatpush1.msra.mxu0 %v483
    %787 = vmatprep.subr.mxu0 %v488
    %788 = vmatpush1.msra.mxu0 %v487
    %789 = vmatprep.subr.mxu0 %v492
    %790 = vmatpush1.msra.mxu0 %v491
    %791 = vmatprep.subr.mxu0 %v496
    %792 = vmatpush1.msra.mxu0 %v495
    %793 = vmatprep.subr.mxu0 %v500
    %794 = vmatpush1.msra.mxu0 %v499
    %795 = vmatprep.subr.mxu0 %v504
    %796 = vmatpush1.msra.mxu0 %v503
    %797 = vmatprep.subr.mxu0 %v508
    %798 = vmatpush1.msra.mxu0 %v507
    %799 = vmatprep.subr.mxu0 %v512
    %800 = vmatpush1.msra.mxu0 %v511
    %801 = vmatprep.subr.mxu0 %v516
    %802 = vmatpush1.msra.mxu0 %v515
    %803 = vmatprep.subr.mxu0 %v520
    %804 = vmatpush1.msra.mxu0 %v519
    %805 = vmatprep.subr.mxu0 %v524
    %806 = vmatpush1.msra.mxu0 %v523
    %807 = vmatprep.subr.mxu0 %v528
    %808 = vmatpush1.msra.mxu0 %v527
    %809 = vmatprep.subr.mxu0 %v532
    %810 = vmatpush1.msra.mxu0 %v531
    %811 = vmatprep.subr.mxu0 %v536
    %812 = vmatpush1.msra.mxu0 %v535
    %813 = vmatprep.subr.mxu0 0.0
    %814 = vmatpush1.msra.mxu0 0.0
    %815 = vmatprep.subr.mxu0 0.0
    %816 = vmatpush1.msra.mxu0 0.0
    %817 = vmatprep.subr.mxu0 0.0
    %818 = vmatpush1.msra.mxu0 0.0
    %819 = vmatprep.subr.mxu0 0.0
    %820 = vmatpush1.msra.mxu0 0.0
    %821 = vmatprep.subr.mxu0 0.0
    %822 = vmatpush1.msra.mxu0 0.0
    %823 = vmatprep.subr.mxu0 0.0
    %824 = vmatpush1.msra.mxu0 0.0
    %825 = vmatprep.subr.mxu0 0.0
    %826 = vmatpush1.msra.mxu0 0.0
    %827 = vmatprep.subr.mxu0 0.0
    %828 = vmatpush1.msra.mxu0 0.0
    %829 = vmatprep.subr.mxu0 0.0
    %830 = vmatpush1.msra.mxu0 0.0
    %831 = vmatprep.subr.mxu0 0.0
    %832 = vmatpush1.msra.mxu0 0.0
    %833 = vmatprep.subr.mxu0 0.0
    %834 = vmatpush1.msra.mxu0 0.0
    %835 = vmatprep.subr.mxu0 0.0
    %836 = vmatpush1.msra.mxu0 0.0
    %837 = vmatprep.subr.mxu0 0.0
    %838 = vmatpush1.msra.mxu0 0.0
    %839 = vmatprep.subr.mxu0 0.0
    %840 = vmatpush1.msra.mxu0 0.0
    %841 = vmatprep.subr.mxu0 0.0
    %842 = vmatpush1.msra.mxu0 0.0
    %843 = vmatprep.subr.mxu0 0.0
    %844 = vmatpush1.msra.mxu0 0.0
    %845 = vmatprep.mubr.f32.mxu0 0.0
    %846 = vmatmul.mubr.f32.gmra.mrb[0].mxu0 %v708
    %v847 = vpop.f32.mrb[0].mxu0
    %v848 = vadd.f32 0.0, %v847
    %v849 = vpop.f32.mrb[0].mxu0
    %v850 = vadd.f32 0.0, %v849
    %851 = vdwg.mxu0
    %v852 = vadd.f32 %v320, %v777
    %v853 = vadd.f32 %v322, %v779
    %v854 = vadd.f32 %v433, %v848
    %v855 = vadd.f32 %v435, %v850
    %v856 = vxor.u32 %v852, 2147483648
    %v857 = vmul.f32 %v856, 1.442695
    %v858 = vpow.pop %v857
    %v859 = vadd.f32 %v858, 1.0
    %v860 = vrcp.pop %v859
    %v861 = vmul.f32 1.0, %v860
    %v862 = vxor.u32 %v853, 2147483648
    %v863 = vmul.f32 %v862, 1.442695
    %v864 = vpow.pop %v863
    %v865 = vadd.f32 %v864, 1.0
    %v866 = vrcp.pop %v865
    %v867 = vmul.f32 1.0, %v866
    %v868 = vtanh.pop %v854
    %v869 = vxor.u32 %v855, 2147483648
    %v870 = vmul.f32 %v869, 1.442695
    %v871 = vpow.pop %v870
    %v872 = vadd.f32 %v871, 1.0
    %v873 = vrcp.pop %v872
    %v874 = vmul.f32 1.0, %v873
    %v875 = vmul.f32 %v867, %v706
    %v876 = vmul.f32 %v861, %v868
    %v877 = vadd.f32 %v875, %v876
    %v878 = vtanh.pop %v877
    %v879 = vmul.f32 %v874, %v878
    %s880 = scalar_lea.vmem [#allocation10], 8
    %881 = vst [vmem:[%s880] sm:$0xff] %v879
    %882 = vmatprep.subr.mxu0 %v474
    %883 = vmatpush1.msra.mxu0 %v473
    %884 = vmatprep.subr.mxu0 %v478
    %885 = vmatpush1.msra.mxu0 %v477
    %886 = vmatprep.subr.mxu0 %v482
    %887 = vmatpush1.msra.mxu0 %v481
    %888 = vmatprep.subr.mxu0 %v486
    %889 = vmatpush1.msra.mxu0 %v485
    %890 = vmatprep.subr.mxu0 %v490
    %891 = vmatpush1.msra.mxu0 %v489
    %892 = vmatprep.subr.mxu0 %v494
    %893 = vmatpush1.msra.mxu0 %v493
    %894 = vmatprep.subr.mxu0 %v498
    %895 = vmatpush1.msra.mxu0 %v497
    %896 = vmatprep.subr.mxu0 %v502
    %897 = vmatpush1.msra.mxu0 %v501
    %898 = vmatprep.subr.mxu0 %v506
    %899 = vmatpush1.msra.mxu0 %v505
    %900 = vmatprep.subr.mxu0 %v510
    %901 = vmatpush1.msra.mxu0 %v509
    %902 = vmatprep.subr.mxu0 %v514
    %903 = vmatpush1.msra.mxu0 %v513
    %904 = vmatprep.subr.mxu0 %v518
    %905 = vmatpush1.msra.mxu0 %v517
    %906 = vmatprep.subr.mxu0 %v522
    %907 = vmatpush1.msra.mxu0 %v521
    %908 = vmatprep.subr.mxu0 %v526
    %909 = vmatpush1.msra.mxu0 %v525
    %910 = vmatprep.subr.mxu0 %v530
    %911 = vmatpush1.msra.mxu0 %v529
    %912 = vmatprep.subr.mxu0 %v534
    %913 = vmatpush1.msra.mxu0 %v533
    %914 = vmatprep.subr.mxu0 0.0
    %915 = vmatpush1.msra.mxu0 0.0
    %916 = vmatprep.subr.mxu0 0.0
    %917 = vmatpush1.msra.mxu0 0.0
    %918 = vmatprep.subr.mxu0 0.0
    %919 = vmatpush1.msra.mxu0 0.0
    %920 = vmatprep.subr.mxu0 0.0
    %921 = vmatpush1.msra.mxu0 0.0
    %922 = vmatprep.subr.mxu0 0.0
    %923 = vmatpush1.msra.mxu0 0.0
    %924 = vmatprep.subr.mxu0 0.0
    %925 = vmatpush1.msra.mxu0 0.0
    %926 = vmatprep.subr.mxu0 0.0
    %927 = vmatpush1.msra.mxu0 0.0
    %928 = vmatprep.subr.mxu0 0.0
    %929 = vmatpush1.msra.mxu0 0.0
    %930 = vmatprep.subr.mxu0 0.0
    %931 = vmatpush1.msra.mxu0 0.0
    %932 = vmatprep.subr.mxu0 0.0
    %933 = vmatpush1.msra.mxu0 0.0
    %934 = vmatprep.subr.mxu0 0.0
    %935 = vmatpush1.msra.mxu0 0.0
    %936 = vmatprep.subr.mxu0 0.0
    %937 = vmatpush1.msra.mxu0 0.0
    %938 = vmatprep.subr.mxu0 0.0
    %939 = vmatpush1.msra.mxu0 0.0
    %940 = vmatprep.subr.mxu0 0.0
    %941 = vmatpush1.msra.mxu0 0.0
    %942 = vmatprep.subr.mxu0 0.0
    %943 = vmatpush1.msra.mxu0 0.0
    %944 = vmatprep.subr.mxu0 0.0
    %945 = vmatpush1.msra.mxu0 0.0
    %946 = vmatprep.mubr.f32.mxu0 0.0
    %947 = vmatmul.mubr.f32.gmra.mrb[0].mxu0 %v879
    %v948 = vpop.f32.mrb[0].mxu0
    %v949 = vadd.f32 0.0, %v948
    %v950 = vpop.f32.mrb[0].mxu0
    %v951 = vadd.f32 0.0, %v950
    %952 = vdwg.mxu0
    %953 = vmatprep.subr.mxu0 %v476
    %954 = vmatpush1.msra.mxu0 %v475
    %955 = vmatprep.subr.mxu0 %v480
    %956 = vmatpush1.msra.mxu0 %v479
    %957 = vmatprep.subr.mxu0 %v484
    %958 = vmatpush1.msra.mxu0 %v483
    %959 = vmatprep.subr.mxu0 %v488
    %960 = vmatpush1.msra.mxu0 %v487
    %961 = vmatprep.subr.mxu0 %v492
    %962 = vmatpush1.msra.mxu0 %v491
    %963 = vmatprep.subr.mxu0 %v496
    %964 = vmatpush1.msra.mxu0 %v495
    %965 = vmatprep.subr.mxu0 %v500
    %966 = vmatpush1.msra.mxu0 %v499
    %967 = vmatprep.subr.mxu0 %v504
    %968 = vmatpush1.msra.mxu0 %v503
    %969 = vmatprep.subr.mxu0 %v508
    %970 = vmatpush1.msra.mxu0 %v507
    %971 = vmatprep.subr.mxu0 %v512
    %972 = vmatpush1.msra.mxu0 %v511
    %973 = vmatprep.subr.mxu0 %v516
    %974 = vmatpush1.msra.mxu0 %v515
    %975 = vmatprep.subr.mxu0 %v520
    %976 = vmatpush1.msra.mxu0 %v519
    %977 = vmatprep.subr.mxu0 %v524
    %978 = vmatpush1.msra.mxu0 %v523
    %979 = vmatprep.subr.mxu0 %v528
    %980 = vmatpush1.msra.mxu0 %v527
    %981 = vmatprep.subr.mxu0 %v532
    %982 = vmatpush1.msra.mxu0 %v531
    %983 = vmatprep.subr.mxu0 %v536
    %984 = vmatpush1.msra.mxu0 %v535
    %985 = vmatprep.subr.mxu0 0.0
    %986 = vmatpush1.msra.mxu0 0.0
    %987 = vmatprep.subr.mxu0 0.0
    %988 = vmatpush1.msra.mxu0 0.0
    %989 = vmatprep.subr.mxu0 0.0
    %990 = vmatpush1.msra.mxu0 0.0
    %991 = vmatprep.subr.mxu0 0.0
    %992 = vmatpush1.msra.mxu0 0.0
    %993 = vmatprep.subr.mxu0 0.0
    %994 = vmatpush1.msra.mxu0 0.0
    %995 = vmatprep.subr.mxu0 0.0
    %996 = vmatpush1.msra.mxu0 0.0
    %997 = vmatprep.subr.mxu0 0.0
    %998 = vmatpush1.msra.mxu0 0.0
    %999 = vmatprep.subr.mxu0 0.0
    %1000 = vmatpush1.msra.mxu0 0.0
    %1001 = vmatprep.subr.mxu0 0.0
    %1002 = vmatpush1.msra.mxu0 0.0
    %1003 = vmatprep.subr.mxu0 0.0
    %1004 = vmatpush1.msra.mxu0 0.0
    %1005 = vmatprep.subr.mxu0 0.0
    %1006 = vmatpush1.msra.mxu0 0.0
    %1007 = vmatprep.subr.mxu0 0.0
    %1008 = vmatpush1.msra.mxu0 0.0
    %1009 = vmatprep.subr.mxu0 0.0
    %1010 = vmatpush1.msra.mxu0 0.0
    %1011 = vmatprep.subr.mxu0 0.0
    %1012 = vmatpush1.msra.mxu0 0.0
    %1013 = vmatprep.subr.mxu0 0.0
    %1014 = vmatpush1.msra.mxu0 0.0
    %1015 = vmatprep.subr.mxu0 0.0
    %1016 = vmatpush1.msra.mxu0 0.0
    %1017 = vmatprep.mubr.f32.mxu0 0.0
    %1018 = vmatmul.mubr.f32.gmra.mrb[0].mxu0 %v879
    %v1019 = vpop.f32.mrb[0].mxu0
    %v1020 = vadd.f32 0.0, %v1019
    %v1021 = vpop.f32.mrb[0].mxu0
    %v1022 = vadd.f32 0.0, %v1021
    %1023 = vdwg.mxu0
    %v1024 = vadd.f32 %v326, %v949
    %v1025 = vadd.f32 %v328, %v951
    %v1026 = vadd.f32 %v439, %v1020
    %v1027 = vadd.f32 %v441, %v1022
    %v1028 = vxor.u32 %v1024, 2147483648
    %v1029 = vmul.f32 %v1028, 1.442695
    %v1030 = vpow.pop %v1029
    %v1031 = vadd.f32 %v1030, 1.0
    %v1032 = vrcp.pop %v1031
    %v1033 = vmul.f32 1.0, %v1032
    %v1034 = vxor.u32 %v1025, 2147483648
    %v1035 = vmul.f32 %v1034, 1.442695
    %v1036 = vpow.pop %v1035
    %v1037 = vadd.f32 %v1036, 1.0
    %v1038 = vrcp.pop %v1037
    %v1039 = vmul.f32 1.0, %v1038
    %v1040 = vtanh.pop %v1026
    %v1041 = vxor.u32 %v1027, 2147483648
    %v1042 = vmul.f32 %v1041, 1.442695
    %v1043 = vpow.pop %v1042
    %v1044 = vadd.f32 %v1043, 1.0
    %v1045 = vrcp.pop %v1044
    %v1046 = vmul.f32 1.0, %v1045
    %v1047 = vmul.f32 %v1039, %v877
    %v1048 = vmul.f32 %v1033, %v1040
    %v1049 = vadd.f32 %v1047, %v1048
    %v1050 = vtanh.pop %v1049
    %v1051 = vmul.f32 %v1046, %v1050
    %s1052 = scalar_lea.vmem [#allocation10], 16
    %1053 = vst [vmem:[%s1052] sm:$0xff] %v1051
    %1054 = vmatprep.subr.mxu0 %v474
    %1055 = vmatpush1.msra.mxu0 %v473
    %1056 = vmatprep.subr.mxu0 %v478
    %1057 = vmatpush1.msra.mxu0 %v477
    %1058 = vmatprep.subr.mxu0 %v482
    %1059 = vmatpush1.msra.mxu0 %v481
    %1060 = vmatprep.subr.mxu0 %v486
    %1061 = vmatpush1.msra.mxu0 %v485
    %1062 = vmatprep.subr.mxu0 %v490
    %1063 = vmatpush1.msra.mxu0 %v489
    %1064 = vmatprep.subr.mxu0 %v494
    %1065 = vmatpush1.msra.mxu0 %v493
    %1066 = vmatprep.subr.mxu0 %v498
    %1067 = vmatpush1.msra.mxu0 %v497
    %1068 = vmatprep.subr.mxu0 %v502
    %1069 = vmatpush1.msra.mxu0 %v501
    %1070 = vmatprep.subr.mxu0 %v506
    %1071 = vmatpush1.msra.mxu0 %v505
    %1072 = vmatprep.subr.mxu0 %v510
    %1073 = vmatpush1.msra.mxu0 %v509
    %1074 = vmatprep.subr.mxu0 %v514
    %1075 = vmatpush1.msra.mxu0 %v513
    %1076 = vmatprep.subr.mxu0 %v518
    %1077 = vmatpush1.msra.mxu0 %v517
    %1078 = vmatprep.subr.mxu0 %v522
    %1079 = vmatpush1.msra.mxu0 %v521
    %1080 = vmatprep.subr.mxu0 %v526
    %1081 = vmatpush1.msra.mxu0 %v525
    %1082 = vmatprep.subr.mxu0 %v530
    %1083 = vmatpush1.msra.mxu0 %v529
    %1084 = vmatprep.subr.mxu0 %v534
    %1085 = vmatpush1.msra.mxu0 %v533
    %1086 = vmatprep.subr.mxu0 0.0
    %1087 = vmatpush1.msra.mxu0 0.0
    %1088 = vmatprep.subr.mxu0 0.0
    %1089 = vmatpush1.msra.mxu0 0.0
    %1090 = vmatprep.subr.mxu0 0.0
    %1091 = vmatpush1.msra.mxu0 0.0
    %1092 = vmatprep.subr.mxu0 0.0
    %1093 = vmatpush1.msra.mxu0 0.0
    %1094 = vmatprep.subr.mxu0 0.0
    %1095 = vmatpush1.msra.mxu0 0.0
    %1096 = vmatprep.subr.mxu0 0.0
    %1097 = vmatpush1.msra.mxu0 0.0
    %1098 = vmatprep.subr.mxu0 0.0
    %1099 = vmatpush1.msra.mxu0 0.0
    %1100 = vmatprep.subr.mxu0 0.0
    %1101 = vmatpush1.msra.mxu0 0.0
    %1102 = vmatprep.subr.mxu0 0.0
    %1103 = vmatpush1.msra.mxu0 0.0
    %1104 = vmatprep.subr.mxu0 0.0
    %1105 = vmatpush1.msra.mxu0 0.0
    %1106 = vmatprep.subr.mxu0 0.0
    %1107 = vmatpush1.msra.mxu0 0.0
    %1108 = vmatprep.subr.mxu0 0.0
    %1109 = vmatpush1.msra.mxu0 0.0
    %1110 = vmatprep.subr.mxu0 0.0
    %1111 = vmatpush1.msra.mxu0 0.0
    %1112 = vmatprep.subr.mxu0 0.0
    %1113 = vmatpush1.msra.mxu0 0.0
    %1114 = vmatprep.subr.mxu0 0.0
    %1115 = vmatpush1.msra.mxu0 0.0
    %1116 = vmatprep.subr.mxu0 0.0
    %1117 = vmatpush1.msra.mxu0 0.0
    %1118 = vmatprep.mubr.f32.mxu0 0.0
    %1119 = vmatmul.mubr.f32.gmra.mrb[0].mxu0 %v1051
    %v1120 = vpop.f32.mrb[0].mxu0
    %v1121 = vadd.f32 0.0, %v1120
    %v1122 = vpop.f32.mrb[0].mxu0
    %v1123 = vadd.f32 0.0, %v1122
    %1124 = vdwg.mxu0
    %1125 = vmatprep.subr.mxu0 %v476
    %1126 = vmatpush1.msra.mxu0 %v475
    %1127 = vmatprep.subr.mxu0 %v480
    %1128 = vmatpush1.msra.mxu0 %v479
    %1129 = vmatprep.subr.mxu0 %v484
    %1130 = vmatpush1.msra.mxu0 %v483
    %1131 = vmatprep.subr.mxu0 %v488
    %1132 = vmatpush1.msra.mxu0 %v487
    %1133 = vmatprep.subr.mxu0 %v492
    %1134 = vmatpush1.msra.mxu0 %v491
    %1135 = vmatprep.subr.mxu0 %v496
    %1136 = vmatpush1.msra.mxu0 %v495
    %1137 = vmatprep.subr.mxu0 %v500
    %1138 = vmatpush1.msra.mxu0 %v499
    %1139 = vmatprep.subr.mxu0 %v504
    %1140 = vmatpush1.msra.mxu0 %v503
    %1141 = vmatprep.subr.mxu0 %v508
    %1142 = vmatpush1.msra.mxu0 %v507
    %1143 = vmatprep.subr.mxu0 %v512
    %1144 = vmatpush1.msra.mxu0 %v511
    %1145 = vmatprep.subr.mxu0 %v516
    %1146 = vmatpush1.msra.mxu0 %v515
    %1147 = vmatprep.subr.mxu0 %v520
    %1148 = vmatpush1.msra.mxu0 %v519
    %1149 = vmatprep.subr.mxu0 %v524
    %1150 = vmatpush1.msra.mxu0 %v523
    %1151 = vmatprep.subr.mxu0 %v528
    %1152 = vmatpush1.msra.mxu0 %v527
    %1153 = vmatprep.subr.mxu0 %v532
    %1154 = vmatpush1.msra.mxu0 %v531
    %1155 = vmatprep.subr.mxu0 %v536
    %1156 = vmatpush1.msra.mxu0 %v535
    %1157 = vmatprep.subr.mxu0 0.0
    %1158 = vmatpush1.msra.mxu0 0.0
    %1159 = vmatprep.subr.mxu0 0.0
    %1160 = vmatpush1.msra.mxu0 0.0
    %1161 = vmatprep.subr.mxu0 0.0
    %1162 = vmatpush1.msra.mxu0 0.0
    %1163 = vmatprep.subr.mxu0 0.0
    %1164 = vmatpush1.msra.mxu0 0.0
    %1165 = vmatprep.subr.mxu0 0.0
    %1166 = vmatpush1.msra.mxu0 0.0
    %1167 = vmatprep.subr.mxu0 0.0
    %1168 = vmatpush1.msra.mxu0 0.0
    %1169 = vmatprep.subr.mxu0 0.0
    %1170 = vmatpush1.msra.mxu0 0.0
    %1171 = vmatprep.subr.mxu0 0.0
    %1172 = vmatpush1.msra.mxu0 0.0
    %1173 = vmatprep.subr.mxu0 0.0
    %1174 = vmatpush1.msra.mxu0 0.0
    %1175 = vmatprep.subr.mxu0 0.0
    %1176 = vmatpush1.msra.mxu0 0.0
    %1177 = vmatprep.subr.mxu0 0.0
    %1178 = vmatpush1.msra.mxu0 0.0
    %1179 = vmatprep.subr.mxu0 0.0
    %1180 = vmatpush1.msra.mxu0 0.0
    %1181 = vmatprep.subr.mxu0 0.0
    %1182 = vmatpush1.msra.mxu0 0.0
    %1183 = vmatprep.subr.mxu0 0.0
    %1184 = vmatpush1.msra.mxu0 0.0
    %1185 = vmatprep.subr.mxu0 0.0
    %1186 = vmatpush1.msra.mxu0 0.0
    %1187 = vmatprep.subr.mxu0 0.0
    %1188 = vmatpush1.msra.mxu0 0.0
    %1189 = vmatprep.mubr.f32.mxu0 0.0
    %1190 = vmatmul.mubr.f32.gmra.mrb[0].mxu0 %v1051
    %v1191 = vpop.f32.mrb[0].mxu0
    %v1192 = vadd.f32 0.0, %v1191
    %v1193 = vpop.f32.mrb[0].mxu0
    %v1194 = vadd.f32 0.0, %v1193
    %1195 = vdwg.mxu0
    %v1196 = vadd.f32 %v332, %v1121
    %v1197 = vadd.f32 %v334, %v1123
    %v1198 = vadd.f32 %v445, %v1192
    %v1199 = vadd.f32 %v447, %v1194
    %v1200 = vxor.u32 %v1196, 2147483648
    %v1201 = vmul.f32 %v1200, 1.442695
    %v1202 = vpow.pop %v1201
    %v1203 = vadd.f32 %v1202, 1.0
    %v1204 = vrcp.pop %v1203
    %v1205 = vmul.f32 1.0, %v1204
    %v1206 = vxor.u32 %v1197, 2147483648
    %v1207 = vmul.f32 %v1206, 1.442695
    %v1208 = vpow.pop %v1207
    %v1209 = vadd.f32 %v1208, 1.0
    %v1210 = vrcp.pop %v1209
    %v1211 = vmul.f32 1.0, %v1210
    %v1212 = vtanh.pop %v1198
    %v1213 = vxor.u32 %v1199, 2147483648
    %v1214 = vmul.f32 %v1213, 1.442695
    %v1215 = vpow.pop %v1214
    %v1216 = vadd.f32 %v1215, 1.0
    %v1217 = vrcp.pop %v1216
    %v1218 = vmul.f32 1.0, %v1217
    %v1219 = vmul.f32 %v1211, %v1049
    %v1220 = vmul.f32 %v1205, %v1212
    %v1221 = vadd.f32 %v1219, %v1220
    %v1222 = vtanh.pop %v1221
    %v1223 = vmul.f32 %v1218, %v1222
    %s1224 = scalar_lea.vmem [#allocation10], 24
    %1225 = vst [vmem:[%s1224] sm:$0xff] %v1223
    %1226 = vmatprep.subr.mxu0 %v474
    %1227 = vmatpush1.msra.mxu0 %v473
    %1228 = vmatprep.subr.mxu0 %v478
    %1229 = vmatpush1.msra.mxu0 %v477
    %1230 = vmatprep.subr.mxu0 %v482
    %1231 = vmatpush1.msra.mxu0 %v481
    %1232 = vmatprep.subr.mxu0 %v486
    %1233 = vmatpush1.msra.mxu0 %v485
    %1234 = vmatprep.subr.mxu0 %v490
    %1235 = vmatpush1.msra.mxu0 %v489
    %1236 = vmatprep.subr.mxu0 %v494
    %1237 = vmatpush1.msra.mxu0 %v493
    %1238 = vmatprep.subr.mxu0 %v498
    %1239 = vmatpush1.msra.mxu0 %v497
    %1240 = vmatprep.subr.mxu0 %v502
    %1241 = vmatpush1.msra.mxu0 %v501
    %1242 = vmatprep.subr.mxu0 %v506
    %1243 = vmatpush1.msra.mxu0 %v505
    %1244 = vmatprep.subr.mxu0 %v510
    %1245 = vmatpush1.msra.mxu0 %v509
    %1246 = vmatprep.subr.mxu0 %v514
    %1247 = vmatpush1.msra.mxu0 %v513
    %1248 = vmatprep.subr.mxu0 %v518
    %1249 = vmatpush1.msra.mxu0 %v517
    %1250 = vmatprep.subr.mxu0 %v522
    %1251 = vmatpush1.msra.mxu0 %v521
    %1252 = vmatprep.subr.mxu0 %v526
    %1253 = vmatpush1.msra.mxu0 %v525
    %1254 = vmatprep.subr.mxu0 %v530
    %1255 = vmatpush1.msra.mxu0 %v529
    %1256 = vmatprep.subr.mxu0 %v534
    %1257 = vmatpush1.msra.mxu0 %v533
    %1258 = vmatprep.subr.mxu0 0.0
    %1259 = vmatpush1.msra.mxu0 0.0
    %1260 = vmatprep.subr.mxu0 0.0
    %1261 = vmatpush1.msra.mxu0 0.0
    %1262 = vmatprep.subr.mxu0 0.0
    %1263 = vmatpush1.msra.mxu0 0.0
    %1264 = vmatprep.subr.mxu0 0.0
    %1265 = vmatpush1.msra.mxu0 0.0
    %1266 = vmatprep.subr.mxu0 0.0
    %1267 = vmatpush1.msra.mxu0 0.0
    %1268 = vmatprep.subr.mxu0 0.0
    %1269 = vmatpush1.msra.mxu0 0.0
    %1270 = vmatprep.subr.mxu0 0.0
    %1271 = vmatpush1.msra.mxu0 0.0
    %1272 = vmatprep.subr.mxu0 0.0
    %1273 = vmatpush1.msra.mxu0 0.0
    %1274 = vmatprep.subr.mxu0 0.0
    %1275 = vmatpush1.msra.mxu0 0.0
    %1276 = vmatprep.subr.mxu0 0.0
    %1277 = vmatpush1.msra.mxu0 0.0
    %1278 = vmatprep.subr.mxu0 0.0
    %1279 = vmatpush1.msra.mxu0 0.0
    %1280 = vmatprep.subr.mxu0 0.0
    %1281 = vmatpush1.msra.mxu0 0.0
    %1282 = vmatprep.subr.mxu0 0.0
    %1283 = vmatpush1.msra.mxu0 0.0
    %1284 = vmatprep.subr.mxu0 0.0
    %1285 = vmatpush1.msra.mxu0 0.0
    %1286 = vmatprep.subr.mxu0 0.0
    %1287 = vmatpush1.msra.mxu0 0.0
    %1288 = vmatprep.subr.mxu0 0.0
    %1289 = vmatpush1.msra.mxu0 0.0
    %1290 = vmatprep.mubr.f32.mxu0 0.0
    %1291 = vmatmul.mubr.f32.gmra.mrb[0].mxu0 %v1223
    %v1292 = vpop.f32.mrb[0].mxu0
    %v1293 = vadd.f32 0.0, %v1292
    %v1294 = vpop.f32.mrb[0].mxu0
    %v1295 = vadd.f32 0.0, %v1294
    %1296 = vdwg.mxu0
    %1297 = vmatprep.subr.mxu0 %v476
    %1298 = vmatpush1.msra.mxu0 %v475
    %1299 = vmatprep.subr.mxu0 %v480
    %1300 = vmatpush1.msra.mxu0 %v479
    %1301 = vmatprep.subr.mxu0 %v484
    %1302 = vmatpush1.msra.mxu0 %v483
    %1303 = vmatprep.subr.mxu0 %v488
    %1304 = vmatpush1.msra.mxu0 %v487
    %1305 = vmatprep.subr.mxu0 %v492
    %1306 = vmatpush1.msra.mxu0 %v491
    %1307 = vmatprep.subr.mxu0 %v496
    %1308 = vmatpush1.msra.mxu0 %v495
    %1309 = vmatprep.subr.mxu0 %v500
    %1310 = vmatpush1.msra.mxu0 %v499
    %1311 = vmatprep.subr.mxu0 %v504
    %1312 = vmatpush1.msra.mxu0 %v503
    %1313 = vmatprep.subr.mxu0 %v508
    %1314 = vmatpush1.msra.mxu0 %v507
    %1315 = vmatprep.subr.mxu0 %v512
    %1316 = vmatpush1.msra.mxu0 %v511
    %1317 = vmatprep.subr.mxu0 %v516
    %1318 = vmatpush1.msra.mxu0 %v515
    %1319 = vmatprep.subr.mxu0 %v520
    %1320 = vmatpush1.msra.mxu0 %v519
    %1321 = vmatprep.subr.mxu0 %v524
    %1322 = vmatpush1.msra.mxu0 %v523
    %1323 = vmatprep.subr.mxu0 %v528
    %1324 = vmatpush1.msra.mxu0 %v527
    %1325 = vmatprep.subr.mxu0 %v532
    %1326 = vmatpush1.msra.mxu0 %v531
    %1327 = vmatprep.subr.mxu0 %v536
    %1328 = vmatpush1.msra.mxu0 %v535
    %1329 = vmatprep.subr.mxu0 0.0
    %1330 = vmatpush1.msra.mxu0 0.0
    %1331 = vmatprep.subr.mxu0 0.0
    %1332 = vmatpush1.msra.mxu0 0.0
    %1333 = vmatprep.subr.mxu0 0.0
    %1334 = vmatpush1.msra.mxu0 0.0
    %1335 = vmatprep.subr.mxu0 0.0
    %1336 = vmatpush1.msra.mxu0 0.0
    %1337 = vmatprep.subr.mxu0 0.0
    %1338 = vmatpush1.msra.mxu0 0.0
    %1339 = vmatprep.subr.mxu0 0.0
    %1340 = vmatpush1.msra.mxu0 0.0
    %1341 = vmatprep.subr.mxu0 0.0
    %1342 = vmatpush1.msra.mxu0 0.0
    %1343 = vmatprep.subr.mxu0 0.0
    %1344 = vmatpush1.msra.mxu0 0.0
    %1345 = vmatprep.subr.mxu0 0.0
    %1346 = vmatpush1.msra.mxu0 0.0
    %1347 = vmatprep.subr.mxu0 0.0
    %1348 = vmatpush1.msra.mxu0 0.0
    %1349 = vmatprep.subr.mxu0 0.0
    %1350 = vmatpush1.msra.mxu0 0.0
    %1351 = vmatprep.subr.mxu0 0.0
    %1352 = vmatpush1.msra.mxu0 0.0
    %1353 = vmatprep.subr.mxu0 0.0
    %1354 = vmatpush1.msra.mxu0 0.0
    %1355 = vmatprep.subr.mxu0 0.0
    %1356 = vmatpush1.msra.mxu0 0.0
    %1357 = vmatprep.subr.mxu0 0.0
    %1358 = vmatpush1.msra.mxu0 0.0
    %1359 = vmatprep.subr.mxu0 0.0
    %1360 = vmatpush1.msra.mxu0 0.0
    %1361 = vmatprep.mubr.f32.mxu0 0.0
    %1362 = vmatmul.mubr.f32.gmra.mrb[0].mxu0 %v1223
    %v1363 = vpop.f32.mrb[0].mxu0
    %v1364 = vadd.f32 0.0, %v1363
    %v1365 = vpop.f32.mrb[0].mxu0
    %v1366 = vadd.f32 0.0, %v1365
    %1367 = vdwg.mxu0
    %v1368 = vadd.f32 %v338, %v1293
    %v1369 = vadd.f32 %v340, %v1295
    %v1370 = vadd.f32 %v451, %v1364
    %v1371 = vadd.f32 %v453, %v1366
    %v1372 = vxor.u32 %v1368, 2147483648
    %v1373 = vmul.f32 %v1372, 1.442695
    %v1374 = vpow.pop %v1373
    %v1375 = vadd.f32 %v1374, 1.0
    %v1376 = vrcp.pop %v1375
    %v1377 = vmul.f32 1.0, %v1376
    %v1378 = vxor.u32 %v1369, 2147483648
    %v1379 = vmul.f32 %v1378, 1.442695
    %v1380 = vpow.pop %v1379
    %v1381 = vadd.f32 %v1380, 1.0
    %v1382 = vrcp.pop %v1381
    %v1383 = vmul.f32 1.0, %v1382
    %v1384 = vtanh.pop %v1370
    %v1385 = vxor.u32 %v1371, 2147483648
    %v1386 = vmul.f32 %v1385, 1.442695
    %v1387 = vpow.pop %v1386
    %v1388 = vadd.f32 %v1387, 1.0
    %v1389 = vrcp.pop %v1388
    %v1390 = vmul.f32 1.0, %v1389
    %v1391 = vmul.f32 %v1383, %v1221
    %v1392 = vmul.f32 %v1377, %v1384
    %v1393 = vadd.f32 %v1391, %v1392
    %v1394 = vtanh.pop %v1393
    %v1395 = vmul.f32 %v1390, %v1394
    %s1396 = scalar_lea.vmem [#allocation10], 32
    %1397 = vst [vmem:[%s1396] sm:$0xff] %v1395
    %1398 = vmatprep.subr.mxu0 %v474
    %1399 = vmatpush1.msra.mxu0 %v473
    %1400 = vmatprep.subr.mxu0 %v478
    %1401 = vmatpush1.msra.mxu0 %v477
    %1402 = vmatprep.subr.mxu0 %v482
    %1403 = vmatpush1.msra.mxu0 %v481
    %1404 = vmatprep.subr.mxu0 %v486
    %1405 = vmatpush1.msra.mxu0 %v485
    %1406 = vmatprep.subr.mxu0 %v490
    %1407 = vmatpush1.msra.mxu0 %v489
    %1408 = vmatprep.subr.mxu0 %v494
    %1409 = vmatpush1.msra.mxu0 %v493
    %1410 = vmatprep.subr.mxu0 %v498
    %1411 = vmatpush1.msra.mxu0 %v497
    %1412 = vmatprep.subr.mxu0 %v502
    %1413 = vmatpush1.msra.mxu0 %v501
    %1414 = vmatprep.subr.mxu0 %v506
    %1415 = vmatpush1.msra.mxu0 %v505
    %1416 = vmatprep.subr.mxu0 %v510
    %1417 = vmatpush1.msra.mxu0 %v509
    %1418 = vmatprep.subr.mxu0 %v514
    %1419 = vmatpush1.msra.mxu0 %v513
    %1420 = vmatprep.subr.mxu0 %v518
    %1421 = vmatpush1.msra.mxu0 %v517
    %1422 = vmatprep.subr.mxu0 %v522
    %1423 = vmatpush1.msra.mxu0 %v521
    %1424 = vmatprep.subr.mxu0 %v526
    %1425 = vmatpush1.msra.mxu0 %v525
    %1426 = vmatprep.subr.mxu0 %v530
    %1427 = vmatpush1.msra.mxu0 %v529
    %1428 = vmatprep.subr.mxu0 %v534
    %1429 = vmatpush1.msra.mxu0 %v533
    %1430 = vmatprep.subr.mxu0 0.0
    %1431 = vmatpush1.msra.mxu0 0.0
    %1432 = vmatprep.subr.mxu0 0.0
    %1433 = vmatpush1.msra.mxu0 0.0
    %1434 = vmatprep.subr.mxu0 0.0
    %1435 = vmatpush1.msra.mxu0 0.0
    %1436 = vmatprep.subr.mxu0 0.0
    %1437 = vmatpush1.msra.mxu0 0.0
    %1438 = vmatprep.subr.mxu0 0.0
    %1439 = vmatpush1.msra.mxu0 0.0
    %1440 = vmatprep.subr.mxu0 0.0
    %1441 = vmatpush1.msra.mxu0 0.0
    %1442 = vmatprep.subr.mxu0 0.0
    %1443 = vmatpush1.msra.mxu0 0.0
    %1444 = vmatprep.subr.mxu0 0.0
    %1445 = vmatpush1.msra.mxu0 0.0
    %1446 = vmatprep.subr.mxu0 0.0
    %1447 = vmatpush1.msra.mxu0 0.0
    %1448 = vmatprep.subr.mxu0 0.0
    %1449 = vmatpush1.msra.mxu0 0.0
    %1450 = vmatprep.subr.mxu0 0.0
    %1451 = vmatpush1.msra.mxu0 0.0
    %1452 = vmatprep.subr.mxu0 0.0
    %1453 = vmatpush1.msra.mxu0 0.0
    %1454 = vmatprep.subr.mxu0 0.0
    %1455 = vmatpush1.msra.mxu0 0.0
    %1456 = vmatprep.subr.mxu0 0.0
    %1457 = vmatpush1.msra.mxu0 0.0
    %1458 = vmatprep.subr.mxu0 0.0
    %1459 = vmatpush1.msra.mxu0 0.0
    %1460 = vmatprep.subr.mxu0 0.0
    %1461 = vmatpush1.msra.mxu0 0.0
    %1462 = vmatprep.mubr.f32.mxu0 0.0
    %1463 = vmatmul.mubr.f32.gmra.mrb[0].mxu0 %v1395
    %v1464 = vpop.f32.mrb[0].mxu0
    %v1465 = vadd.f32 0.0, %v1464
    %v1466 = vpop.f32.mrb[0].mxu0
    %v1467 = vadd.f32 0.0, %v1466
    %1468 = vdwg.mxu0
    %1469 = vmatprep.subr.mxu0 %v476
    %1470 = vmatpush1.msra.mxu0 %v475
    %1471 = vmatprep.subr.mxu0 %v480
    %1472 = vmatpush1.msra.mxu0 %v479
    %1473 = vmatprep.subr.mxu0 %v484
    %1474 = vmatpush1.msra.mxu0 %v483
    %1475 = vmatprep.subr.mxu0 %v488
    %1476 = vmatpush1.msra.mxu0 %v487
    %1477 = vmatprep.subr.mxu0 %v492
    %1478 = vmatpush1.msra.mxu0 %v491
    %1479 = vmatprep.subr.mxu0 %v496
    %1480 = vmatpush1.msra.mxu0 %v495
    %1481 = vmatprep.subr.mxu0 %v500
    %1482 = vmatpush1.msra.mxu0 %v499
    %1483 = vmatprep.subr.mxu0 %v504
    %1484 = vmatpush1.msra.mxu0 %v503
    %1485 = vmatprep.subr.mxu0 %v508
    %1486 = vmatpush1.msra.mxu0 %v507
    %1487 = vmatprep.subr.mxu0 %v512
    %1488 = vmatpush1.msra.mxu0 %v511
    %1489 = vmatprep.subr.mxu0 %v516
    %1490 = vmatpush1.msra.mxu0 %v515
    %1491 = vmatprep.subr.mxu0 %v520
    %1492 = vmatpush1.msra.mxu0 %v519
    %1493 = vmatprep.subr.mxu0 %v524
    %1494 = vmatpush1.msra.mxu0 %v523
    %1495 = vmatprep.subr.mxu0 %v528
    %1496 = vmatpush1.msra.mxu0 %v527
    %1497 = vmatprep.subr.mxu0 %v532
    %1498 = vmatpush1.msra.mxu0 %v531
    %1499 = vmatprep.subr.mxu0 %v536
    %1500 = vmatpush1.msra.mxu0 %v535
    %1501 = vmatprep.subr.mxu0 0.0
    %1502 = vmatpush1.msra.mxu0 0.0
    %1503 = vmatprep.subr.mxu0 0.0
    %1504 = vmatpush1.msra.mxu0 0.0
    %1505 = vmatprep.subr.mxu0 0.0
    %1506 = vmatpush1.msra.mxu0 0.0
    %1507 = vmatprep.subr.mxu0 0.0
    %1508 = vmatpush1.msra.mxu0 0.0
    %1509 = vmatprep.subr.mxu0 0.0
    %1510 = vmatpush1.msra.mxu0 0.0
    %1511 = vmatprep.subr.mxu0 0.0
    %1512 = vmatpush1.msra.mxu0 0.0
    %1513 = vmatprep.subr.mxu0 0.0
    %1514 = vmatpush1.msra.mxu0 0.0
    %1515 = vmatprep.subr.mxu0 0.0
    %1516 = vmatpush1.msra.mxu0 0.0
    %1517 = vmatprep.subr.mxu0 0.0
    %1518 = vmatpush1.msra.mxu0 0.0
    %1519 = vmatprep.subr.mxu0 0.0
    %1520 = vmatpush1.msra.mxu0 0.0
    %1521 = vmatprep.subr.mxu0 0.0
    %1522 = vmatpush1.msra.mxu0 0.0
    %1523 = vmatprep.subr.mxu0 0.0
    %1524 = vmatpush1.msra.mxu0 0.0
    %1525 = vmatprep.subr.mxu0 0.0
    %1526 = vmatpush1.msra.mxu0 0.0
    %1527 = vmatprep.subr.mxu0 0.0
    %1528 = vmatpush1.msra.mxu0 0.0
    %1529 = vmatprep.subr.mxu0 0.0
    %1530 = vmatpush1.msra.mxu0 0.0
    %1531 = vmatprep.subr.mxu0 0.0
    %1532 = vmatpush1.msra.mxu0 0.0
    %1533 = vmatprep.mubr.f32.mxu0 0.0
    %1534 = vmatmul.mubr.f32.gmra.mrb[0].mxu0 %v1395
    %v1535 = vpop.f32.mrb[0].mxu0
    %v1536 = vadd.f32 0.0, %v1535
    %v1537 = vpop.f32.mrb[0].mxu0
    %v1538 = vadd.f32 0.0, %v1537
    %1539 = vdwg.mxu0
    %v1540 = vadd.f32 %v344, %v1465
    %v1541 = vadd.f32 %v346, %v1467
    %v1542 = vadd.f32 %v457, %v1536
    %v1543 = vadd.f32 %v459, %v1538
    %v1544 = vxor.u32 %v1540, 2147483648
    %v1545 = vmul.f32 %v1544, 1.442695
    %v1546 = vpow.pop %v1545
    %v1547 = vadd.f32 %v1546, 1.0
    %v1548 = vrcp.pop %v1547
    %v1549 = vmul.f32 1.0, %v1548
    %v1550 = vxor.u32 %v1541, 2147483648
    %v1551 = vmul.f32 %v1550, 1.442695
    %v1552 = vpow.pop %v1551
    %v1553 = vadd.f32 %v1552, 1.0
    %v1554 = vrcp.pop %v1553
    %v1555 = vmul.f32 1.0, %v1554
    %v1556 = vtanh.pop %v1542
    %v1557 = vxor.u32 %v1543, 2147483648
    %v1558 = vmul.f32 %v1557, 1.442695
    %v1559 = vpow.pop %v1558
    %v1560 = vadd.f32 %v1559, 1.0
    %v1561 = vrcp.pop %v1560
    %v1562 = vmul.f32 1.0, %v1561
    %v1563 = vmul.f32 %v1555, %v1393
    %v1564 = vmul.f32 %v1549, %v1556
    %v1565 = vadd.f32 %v1563, %v1564
    %v1566 = vtanh.pop %v1565
    %v1567 = vmul.f32 %v1562, %v1566
    %s1568 = scalar_lea.vmem [#allocation10], 40
    %1569 = vst [vmem:[%s1568] sm:$0xff] %v1567
    %1570 = vmatprep.subr.mxu0 %v474
    %1571 = vmatpush1.msra.mxu0 %v473
    %1572 = vmatprep.subr.mxu0 %v478
    %1573 = vmatpush1.msra.mxu0 %v477
    %1574 = vmatprep.subr.mxu0 %v482
    %1575 = vmatpush1.msra.mxu0 %v481
    %1576 = vmatprep.subr.mxu0 %v486
    %1577 = vmatpush1.msra.mxu0 %v485
    %1578 = vmatprep.subr.mxu0 %v490
    %1579 = vmatpush1.msra.mxu0 %v489
    %1580 = vmatprep.subr.mxu0 %v494
    %1581 = vmatpush1.msra.mxu0 %v493
    %1582 = vmatprep.subr.mxu0 %v498
    %1583 = vmatpush1.msra.mxu0 %v497
    %1584 = vmatprep.subr.mxu0 %v502
    %1585 = vmatpush1.msra.mxu0 %v501
    %1586 = vmatprep.subr.mxu0 %v506
    %1587 = vmatpush1.msra.mxu0 %v505
    %1588 = vmatprep.subr.mxu0 %v510
    %1589 = vmatpush1.msra.mxu0 %v509
    %1590 = vmatprep.subr.mxu0 %v514
    %1591 = vmatpush1.msra.mxu0 %v513
    %1592 = vmatprep.subr.mxu0 %v518
    %1593 = vmatpush1.msra.mxu0 %v517
    %1594 = vmatprep.subr.mxu0 %v522
    %1595 = vmatpush1.msra.mxu0 %v521
    %1596 = vmatprep.subr.mxu0 %v526
    %1597 = vmatpush1.msra.mxu0 %v525
    %1598 = vmatprep.subr.mxu0 %v530
    %1599 = vmatpush1.msra.mxu0 %v529
    %1600 = vmatprep.subr.mxu0 %v534
    %1601 = vmatpush1.msra.mxu0 %v533
    %1602 = vmatprep.subr.mxu0 0.0
    %1603 = vmatpush1.msra.mxu0 0.0
    %1604 = vmatprep.subr.mxu0 0.0
    %1605 = vmatpush1.msra.mxu0 0.0
    %1606 = vmatprep.subr.mxu0 0.0
    %1607 = vmatpush1.msra.mxu0 0.0
    %1608 = vmatprep.subr.mxu0 0.0
    %1609 = vmatpush1.msra.mxu0 0.0
    %1610 = vmatprep.subr.mxu0 0.0
    %1611 = vmatpush1.msra.mxu0 0.0
    %1612 = vmatprep.subr.mxu0 0.0
    %1613 = vmatpush1.msra.mxu0 0.0
    %1614 = vmatprep.subr.mxu0 0.0
    %1615 = vmatpush1.msra.mxu0 0.0
    %1616 = vmatprep.subr.mxu0 0.0
    %1617 = vmatpush1.msra.mxu0 0.0
    %1618 = vmatprep.subr.mxu0 0.0
    %1619 = vmatpush1.msra.mxu0 0.0
    %1620 = vmatprep.subr.mxu0 0.0
    %1621 = vmatpush1.msra.mxu0 0.0
    %1622 = vmatprep.subr.mxu0 0.0
    %1623 = vmatpush1.msra.mxu0 0.0
    %1624 = vmatprep.subr.mxu0 0.0
    %1625 = vmatpush1.msra.mxu0 0.0
    %1626 = vmatprep.subr.mxu0 0.0
    %1627 = vmatpush1.msra.mxu0 0.0
    %1628 = vmatprep.subr.mxu0 0.0
    %1629 = vmatpush1.msra.mxu0 0.0
    %1630 = vmatprep.subr.mxu0 0.0
    %1631 = vmatpush1.msra.mxu0 0.0
    %1632 = vmatprep.subr.mxu0 0.0
    %1633 = vmatpush1.msra.mxu0 0.0
    %1634 = vmatprep.mubr.f32.mxu0 0.0
    %1635 = vmatmul.mubr.f32.gmra.mrb[0].mxu0 %v1567
    %v1636 = vpop.f32.mrb[0].mxu0
    %v1637 = vadd.f32 0.0, %v1636
    %v1638 = vpop.f32.mrb[0].mxu0
    %v1639 = vadd.f32 0.0, %v1638
    %1640 = vdwg.mxu0
    %1641 = vmatprep.subr.mxu0 %v476
    %1642 = vmatpush1.msra.mxu0 %v475
    %1643 = vmatprep.subr.mxu0 %v480
    %1644 = vmatpush1.msra.mxu0 %v479
    %1645 = vmatprep.subr.mxu0 %v484
    %1646 = vmatpush1.msra.mxu0 %v483
    %1647 = vmatprep.subr.mxu0 %v488
    %1648 = vmatpush1.msra.mxu0 %v487
    %1649 = vmatprep.subr.mxu0 %v492
    %1650 = vmatpush1.msra.mxu0 %v491
    %1651 = vmatprep.subr.mxu0 %v496
    %1652 = vmatpush1.msra.mxu0 %v495
    %1653 = vmatprep.subr.mxu0 %v500
    %1654 = vmatpush1.msra.mxu0 %v499
    %1655 = vmatprep.subr.mxu0 %v504
    %1656 = vmatpush1.msra.mxu0 %v503
    %1657 = vmatprep.subr.mxu0 %v508
    %1658 = vmatpush1.msra.mxu0 %v507
    %1659 = vmatprep.subr.mxu0 %v512
    %1660 = vmatpush1.msra.mxu0 %v511
    %1661 = vmatprep.subr.mxu0 %v516
    %1662 = vmatpush1.msra.mxu0 %v515
    %1663 = vmatprep.subr.mxu0 %v520
    %1664 = vmatpush1.msra.mxu0 %v519
    %1665 = vmatprep.subr.mxu0 %v524
    %1666 = vmatpush1.msra.mxu0 %v523
    %1667 = vmatprep.subr.mxu0 %v528
    %1668 = vmatpush1.msra.mxu0 %v527
    %1669 = vmatprep.subr.mxu0 %v532
    %1670 = vmatpush1.msra.mxu0 %v531
    %1671 = vmatprep.subr.mxu0 %v536
    %1672 = vmatpush1.msra.mxu0 %v535
    %1673 = vmatprep.subr.mxu0 0.0
    %1674 = vmatpush1.msra.mxu0 0.0
    %1675 = vmatprep.subr.mxu0 0.0
    %1676 = vmatpush1.msra.mxu0 0.0
    %1677 = vmatprep.subr.mxu0 0.0
    %1678 = vmatpush1.msra.mxu0 0.0
    %1679 = vmatprep.subr.mxu0 0.0
    %1680 = vmatpush1.msra.mxu0 0.0
    %1681 = vmatprep.subr.mxu0 0.0
    %1682 = vmatpush1.msra.mxu0 0.0
    %1683 = vmatprep.subr.mxu0 0.0
    %1684 = vmatpush1.msra.mxu0 0.0
    %1685 = vmatprep.subr.mxu0 0.0
    %1686 = vmatpush1.msra.mxu0 0.0
    %1687 = vmatprep.subr.mxu0 0.0
    %1688 = vmatpush1.msra.mxu0 0.0
    %1689 = vmatprep.subr.mxu0 0.0
    %1690 = vmatpush1.msra.mxu0 0.0
    %1691 = vmatprep.subr.mxu0 0.0
    %1692 = vmatpush1.msra.mxu0 0.0
    %1693 = vmatprep.subr.mxu0 0.0
    %1694 = vmatpush1.msra.mxu0 0.0
    %1695 = vmatprep.subr.mxu0 0.0
    %1696 = vmatpush1.msra.mxu0 0.0
    %1697 = vmatprep.subr.mxu0 0.0
    %1698 = vmatpush1.msra.mxu0 0.0
    %1699 = vmatprep.subr.mxu0 0.0
    %1700 = vmatpush1.msra.mxu0 0.0
    %1701 = vmatprep.subr.mxu0 0.0
    %1702 = vmatpush1.msra.mxu0 0.0
    %1703 = vmatprep.subr.mxu0 0.0
    %1704 = vmatpush1.msra.mxu0 0.0
    %1705 = vmatprep.mubr.f32.mxu0 0.0
    %1706 = vmatmul.mubr.f32.gmra.mrb[0].mxu0 %v1567
    %v1707 = vpop.f32.mrb[0].mxu0
    %v1708 = vadd.f32 0.0, %v1707
    %v1709 = vpop.f32.mrb[0].mxu0
    %v1710 = vadd.f32 0.0, %v1709
    %1711 = vdwg.mxu0
    %v1712 = vadd.f32 %v350, %v1637
    %v1713 = vadd.f32 %v352, %v1639
    %v1714 = vadd.f32 %v463, %v1708
    %v1715 = vadd.f32 %v465, %v1710
    %v1716 = vxor.u32 %v1712, 2147483648
    %v1717 = vmul.f32 %v1716, 1.442695
    %v1718 = vpow.pop %v1717
    %v1719 = vadd.f32 %v1718, 1.0
    %v1720 = vrcp.pop %v1719
    %v1721 = vmul.f32 1.0, %v1720
    %v1722 = vxor.u32 %v1713, 2147483648
    %v1723 = vmul.f32 %v1722, 1.442695
    %v1724 = vpow.pop %v1723
    %v1725 = vadd.f32 %v1724, 1.0
    %v1726 = vrcp.pop %v1725
    %v1727 = vmul.f32 1.0, %v1726
    %v1728 = vtanh.pop %v1714
    %v1729 = vxor.u32 %v1715, 2147483648
    %v1730 = vmul.f32 %v1729, 1.442695
    %v1731 = vpow.pop %v1730
    %v1732 = vadd.f32 %v1731, 1.0
    %v1733 = vrcp.pop %v1732
    %v1734 = vmul.f32 1.0, %v1733
    %v1735 = vmul.f32 %v1727, %v1565
    %v1736 = vmul.f32 %v1721, %v1728
    %v1737 = vadd.f32 %v1735, %v1736
    %v1738 = vtanh.pop %v1737
    %v1739 = vmul.f32 %v1734, %v1738
    %s1740 = scalar_lea.vmem [#allocation10], 48
    %1741 = vst [vmem:[%s1740] sm:$0xff] %v1739
    %1742 = vmatprep.subr.mxu0 %v474
    %1743 = vmatpush1.msra.mxu0 %v473
    %1744 = vmatprep.subr.mxu0 %v478
    %1745 = vmatpush1.msra.mxu0 %v477
    %1746 = vmatprep.subr.mxu0 %v482
    %1747 = vmatpush1.msra.mxu0 %v481
    %1748 = vmatprep.subr.mxu0 %v486
    %1749 = vmatpush1.msra.mxu0 %v485
    %1750 = vmatprep.subr.mxu0 %v490
    %1751 = vmatpush1.msra.mxu0 %v489
    %1752 = vmatprep.subr.mxu0 %v494
    %1753 = vmatpush1.msra.mxu0 %v493
    %1754 = vmatprep.subr.mxu0 %v498
    %1755 = vmatpush1.msra.mxu0 %v497
    %1756 = vmatprep.subr.mxu0 %v502
    %1757 = vmatpush1.msra.mxu0 %v501
    %1758 = vmatprep.subr.mxu0 %v506
    %1759 = vmatpush1.msra.mxu0 %v505
    %1760 = vmatprep.subr.mxu0 %v510
    %1761 = vmatpush1.msra.mxu0 %v509
    %1762 = vmatprep.subr.mxu0 %v514
    %1763 = vmatpush1.msra.mxu0 %v513
    %1764 = vmatprep.subr.mxu0 %v518
    %1765 = vmatpush1.msra.mxu0 %v517
    %1766 = vmatprep.subr.mxu0 %v522
    %1767 = vmatpush1.msra.mxu0 %v521
    %1768 = vmatprep.subr.mxu0 %v526
    %1769 = vmatpush1.msra.mxu0 %v525
    %1770 = vmatprep.subr.mxu0 %v530
    %1771 = vmatpush1.msra.mxu0 %v529
    %1772 = vmatprep.subr.mxu0 %v534
    %1773 = vmatpush1.msra.mxu0 %v533
    %1774 = vmatprep.subr.mxu0 0.0
    %1775 = vmatpush1.msra.mxu0 0.0
    %1776 = vmatprep.subr.mxu0 0.0
    %1777 = vmatpush1.msra.mxu0 0.0
    %1778 = vmatprep.subr.mxu0 0.0
    %1779 = vmatpush1.msra.mxu0 0.0
    %1780 = vmatprep.subr.mxu0 0.0
    %1781 = vmatpush1.msra.mxu0 0.0
    %1782 = vmatprep.subr.mxu0 0.0
    %1783 = vmatpush1.msra.mxu0 0.0
    %1784 = vmatprep.subr.mxu0 0.0
    %1785 = vmatpush1.msra.mxu0 0.0
    %1786 = vmatprep.subr.mxu0 0.0
    %1787 = vmatpush1.msra.mxu0 0.0
    %1788 = vmatprep.subr.mxu0 0.0
    %1789 = vmatpush1.msra.mxu0 0.0
    %1790 = vmatprep.subr.mxu0 0.0
    %1791 = vmatpush1.msra.mxu0 0.0
    %1792 = vmatprep.subr.mxu0 0.0
    %1793 = vmatpush1.msra.mxu0 0.0
    %1794 = vmatprep.subr.mxu0 0.0
    %1795 = vmatpush1.msra.mxu0 0.0
    %1796 = vmatprep.subr.mxu0 0.0
    %1797 = vmatpush1.msra.mxu0 0.0
    %1798 = vmatprep.subr.mxu0 0.0
    %1799 = vmatpush1.msra.mxu0 0.0
    %1800 = vmatprep.subr.mxu0 0.0
    %1801 = vmatpush1.msra.mxu0 0.0
    %1802 = vmatprep.subr.mxu0 0.0
    %1803 = vmatpush1.msra.mxu0 0.0
    %1804 = vmatprep.subr.mxu0 0.0
    %1805 = vmatpush1.msra.mxu0 0.0
    %1806 = vmatprep.mubr.f32.mxu0 0.0
    %1807 = vmatmul.mubr.f32.gmra.mrb[0].mxu0 %v1739
    %v1808 = vpop.f32.mrb[0].mxu0
    %v1809 = vadd.f32 0.0, %v1808
    %v1810 = vpop.f32.mrb[0].mxu0
    %v1811 = vadd.f32 0.0, %v1810
    %1812 = vdwg.mxu0
    %1813 = vmatprep.subr.mxu0 %v476
    %1814 = vmatpush1.msra.mxu0 %v475
    %1815 = vmatprep.subr.mxu0 %v480
    %1816 = vmatpush1.msra.mxu0 %v479
    %1817 = vmatprep.subr.mxu0 %v484
    %1818 = vmatpush1.msra.mxu0 %v483
    %1819 = vmatprep.subr.mxu0 %v488
    %1820 = vmatpush1.msra.mxu0 %v487
    %1821 = vmatprep.subr.mxu0 %v492
    %1822 = vmatpush1.msra.mxu0 %v491
    %1823 = vmatprep.subr.mxu0 %v496
    %1824 = vmatpush1.msra.mxu0 %v495
    %1825 = vmatprep.subr.mxu0 %v500
    %1826 = vmatpush1.msra.mxu0 %v499
    %1827 = vmatprep.subr.mxu0 %v504
    %1828 = vmatpush1.msra.mxu0 %v503
    %1829 = vmatprep.subr.mxu0 %v508
    %1830 = vmatpush1.msra.mxu0 %v507
    %1831 = vmatprep.subr.mxu0 %v512
    %1832 = vmatpush1.msra.mxu0 %v511
    %1833 = vmatprep.subr.mxu0 %v516
    %1834 = vmatpush1.msra.mxu0 %v515
    %1835 = vmatprep.subr.mxu0 %v520
    %1836 = vmatpush1.msra.mxu0 %v519
    %1837 = vmatprep.subr.mxu0 %v524
    %1838 = vmatpush1.msra.mxu0 %v523
    %1839 = vmatprep.subr.mxu0 %v528
    %1840 = vmatpush1.msra.mxu0 %v527
    %1841 = vmatprep.subr.mxu0 %v532
    %1842 = vmatpush1.msra.mxu0 %v531
    %1843 = vmatprep.subr.mxu0 %v536
    %1844 = vmatpush1.msra.mxu0 %v535
    %1845 = vmatprep.subr.mxu0 0.0
    %1846 = vmatpush1.msra.mxu0 0.0
    %1847 = vmatprep.subr.mxu0 0.0
    %1848 = vmatpush1.msra.mxu0 0.0
    %1849 = vmatprep.subr.mxu0 0.0
    %1850 = vmatpush1.msra.mxu0 0.0
    %1851 = vmatprep.subr.mxu0 0.0
    %1852 = vmatpush1.msra.mxu0 0.0
    %1853 = vmatprep.subr.mxu0 0.0
    %1854 = vmatpush1.msra.mxu0 0.0
    %1855 = vmatprep.subr.mxu0 0.0
    %1856 = vmatpush1.msra.mxu0 0.0
    %1857 = vmatprep.subr.mxu0 0.0
    %1858 = vmatpush1.msra.mxu0 0.0
    %1859 = vmatprep.subr.mxu0 0.0
    %1860 = vmatpush1.msra.mxu0 0.0
    %1861 = vmatprep.subr.mxu0 0.0
    %1862 = vmatpush1.msra.mxu0 0.0
    %1863 = vmatprep.subr.mxu0 0.0
    %1864 = vmatpush1.msra.mxu0 0.0
    %1865 = vmatprep.subr.mxu0 0.0
    %1866 = vmatpush1.msra.mxu0 0.0
    %1867 = vmatprep.subr.mxu0 0.0
    %1868 = vmatpush1.msra.mxu0 0.0
    %1869 = vmatprep.subr.mxu0 0.0
    %1870 = vmatpush1.msra.mxu0 0.0
    %1871 = vmatprep.subr.mxu0 0.0
    %1872 = vmatpush1.msra.mxu0 0.0
    %1873 = vmatprep.subr.mxu0 0.0
    %1874 = vmatpush1.msra.mxu0 0.0
    %1875 = vmatprep.subr.mxu0 0.0
    %1876 = vmatpush1.msra.mxu0 0.0
    %1877 = vmatprep.mubr.f32.mxu0 0.0
    %1878 = vmatmul.mubr.f32.gmra.mrb[0].mxu0 %v1739
    %v1879 = vpop.f32.mrb[0].mxu0
    %v1880 = vadd.f32 0.0, %v1879
    %v1881 = vpop.f32.mrb[0].mxu0
    %v1882 = vadd.f32 0.0, %v1881
    %1883 = vdwg.mxu0
    %v1884 = vadd.f32 %v356, %v1809
    %v1885 = vadd.f32 %v358, %v1811
    %v1886 = vadd.f32 %v469, %v1880
    %v1887 = vadd.f32 %v471, %v1882
    %v1888 = vxor.u32 %v1884, 2147483648
    %v1889 = vmul.f32 %v1888, 1.442695
    %v1890 = vpow.pop %v1889
    %v1891 = vadd.f32 %v1890, 1.0
    %v1892 = vrcp.pop %v1891
    %v1893 = vmul.f32 1.0, %v1892
    %v1894 = vxor.u32 %v1885, 2147483648
    %v1895 = vmul.f32 %v1894, 1.442695
    %v1896 = vpow.pop %v1895
    %v1897 = vadd.f32 %v1896, 1.0
    %v1898 = vrcp.pop %v1897
    %v1899 = vmul.f32 1.0, %v1898
    %v1900 = vtanh.pop %v1886
    %v1901 = vxor.u32 %v1887, 2147483648
    %v1902 = vmul.f32 %v1901, 1.442695
    %v1903 = vpow.pop %v1902
    %v1904 = vadd.f32 %v1903, 1.0
    %v1905 = vrcp.pop %v1904
    %v1906 = vmul.f32 1.0, %v1905
    %v1907 = vmul.f32 %v1899, %v1737
    %v1908 = vmul.f32 %v1893, %v1900
    %v1909 = vadd.f32 %v1907, %v1908
    %v1910 = vtanh.pop %v1909
    %v1911 = vmul.f32 %v1906, %v1910
    %s1912 = scalar_lea.vmem [#allocation10], 56
    %1913 = vst [vmem:[%s1912] sm:$0xff] %v1911
    %1914 = vst [vmem:[#allocation11] sm:$0xff] %v1911
    %1915 = vst [vmem:[#allocation13] sm:$0xff] %v1909
    // Predicated region
    $region42: #{tpu_custom_call.1} parent=1 // pred_check
      _
    $region43: #{tpu_custom_call.1} parent=1 // pred_check_branch
      %1917 = sbr.rel (0) target = $region45
    $region44: #{tpu_custom_call.1} parent=1 // pred_region
      %s1919 = ssub.s32 1024, 1024
      %1920 = vsyncadd [#allocation4], %s1919
      %s1921 = sshll.u32 [#allocation10], 4
      %s1922 = int_to_ptr.vmem [resolvable:$true] %s1921
      %1927 = dma.vmem_to_hbm [thread:$0]  %s1922, 1024, %s6, [#allocation4], 128, 128, 8
    $region45: #{tpu_custom_call.1} parent=1 // pred_fallthru
      _
    // Predicated region
    $region46: #{tpu_custom_call.1} parent=1 // pred_check
      _
    $region47: #{tpu_custom_call.1} parent=1 // pred_check_branch
      %1929 = sbr.rel (0) target = $region49
    $region48: #{tpu_custom_call.1} parent=1 // pred_region
      %s1931 = ssub.s32 128, 128
      %1932 = vsyncadd [#allocation12], %s1931
      %s1934 = sshll.u32 [#allocation11], 4
      %s1935 = int_to_ptr.vmem [resolvable:$true] %s1934
      %1937 = dma.vmem_to_hbm [thread:$0]  %s1935, 128, %s7, [#allocation12]
    $region49: #{tpu_custom_call.1} parent=1 // pred_fallthru
      _
    // Predicated region
    $region50: #{tpu_custom_call.1} parent=1 // pred_check
      _
    $region51: #{tpu_custom_call.1} parent=1 // pred_check_branch
      %1939 = sbr.rel (0) target = $region53
    $region52: #{tpu_custom_call.1} parent=1 // pred_region
      %s1941 = ssub.s32 128, 128
      %1942 = vsyncadd [#allocation12], %s1941
      %s1944 = sshll.u32 [#allocation13], 4
      %s1945 = int_to_ptr.vmem [resolvable:$true] %s1944
      %1947 = dma.vmem_to_hbm [thread:$0]  %s1945, 128, %s8, [#allocation12]
    $region53: #{tpu_custom_call.1} parent=1 // pred_fallthru
      _
    // Predicated region
    $region54: #{tpu_custom_call.1} parent=1 // pred_check
      _
    $region55: #{tpu_custom_call.1} parent=1 // pred_check_branch
      %1949 = sbr.rel (0) target = $region57
    $region56: #{tpu_custom_call.1} parent=1 // pred_region
      %1950 = dma.done [#allocation4], 1024
    $region57: #{tpu_custom_call.1} parent=1 // pred_fallthru
      _
    // Predicated region
    $region58: #{tpu_custom_call.1} parent=1 // pred_check
      _
    $region59: #{tpu_custom_call.1} parent=1 // pred_check_branch
      %1952 = sbr.rel (0) target = $region61
    $region60: #{tpu_custom_call.1} parent=1 // pred_region
      %1953 = dma.done [#allocation12], 128
    $region61: #{tpu_custom_call.1} parent=1 // pred_fallthru
      _
    // Predicated region
    $region62: #{tpu_custom_call.1} parent=1 // pred_check
      _
    $region63: #{tpu_custom_call.1} parent=1 // pred_check_branch
      %1955 = sbr.rel (0) target = $region65
    $region64: #{tpu_custom_call.1} parent=1 // pred_region
      %1956 = dma.done [#allocation12], 128
    $region65: #{tpu_custom_call.1} parent=1 // pred_fallthru
      _
    %1957 = vsyncpa [#allocation3], 1
    %1958 = vsyncpa [#allocation6], 1
    %1959 = vsyncpa [#allocation9], 1
    %1960 = vsyncpa [#allocation4], 1
    %1961 = vsyncpa [#allocation12], 1

</llo_original>
